<compile_context>
chip_gen: v7x
topology: tpu7x:2x2x1
jax: 0.10.0
libtpu: 0.0.40
codegen_flags: <defaults>
</compile_context>

<pallas_src>
import functools

import jax
import jax.numpy as jnp
from jax import lax
from jax.experimental import pallas as pl
from jax.experimental.pallas import tpu as pltpu


_NEG_INF = -1e9


def _round_up(x, m):
    return ((x + m - 1) // m) * m


def _chip_vmem_cap_bytes():
    """Scoped-VMEM ceiling derived from the actual chip (leave 16 MiB headroom)."""
    cap = None
    try:
        info = pltpu.get_tpu_info()
        for attr in ("vmem_capacity_bytes", "vmem_size_bytes", "vmem_bytes"):
            v = getattr(info, attr, None)
            if v:
                cap = int(v)
                break
    except Exception:
        cap = None
    if not cap:
        cap = 64 * 2**20  # conservative (v7x-sized) fallback
    return max(32 * 2**20, cap - 16 * 2**20)


def _vmem_estimate_bytes(T_pad, E, q_tile, out_itemsize, mask_rows, mask_itemsize,
                         has_mask):
    bf16, f32 = 2, 4
    dma = 2 * (T_pad * E * bf16                      # hidden block (double buffered)
               + 4 * E * E * bf16 + 3 * E * f32      # weights / biases
               + q_tile * E * out_itemsize)          # output block
    if has_mask:
        dma += 2 * mask_rows * T_pad * mask_itemsize
    scratch = 2 * T_pad * E * bf16 + q_tile * E * bf16    # cached K/V + out slab
    temps = (2 * T_pad * E * f32                     # K/V in f32 while being built
             + q_tile * E * (f32 + bf16)             # Q (f32 + bf16 copy)
             + 4 * q_tile * T_pad * f32              # mask bcast + scores/exp/probs
             + 2 * q_tile * E * f32)                 # out-proj f32 result + slack
    return dma + scratch + temps


def _choose_tiles(T, E, out_itemsize, full_mask, mask_itemsize, cap):
    """Pick (q_tile, T_pad): q_tile in 64..256 keeps the MXU M dim full and the
    (q_tile, T) f32 score temporaries bounded; shrink q_tile if VMEM-tight."""
    if T <= 256:
        q = _round_up(max(T, 8), 8)
        return q, q
    # Prefer 256; fall back to 128 if it wastes noticeably less padding.
    q_tile = 256 if (_round_up(T, 256) - T) <= (_round_up(T, 128) - T) else 128
    while True:
        T_pad = _round_up(T, q_tile)
        mask_rows = q_tile if full_mask else 1
        est = _vmem_estimate_bytes(T_pad, E, q_tile, out_itemsize, mask_rows,
                                   mask_itemsize, True)
        if est <= cap or q_tile <= 64:
            return q_tile, T_pad
        q_tile //= 2


def _attn_kernel(*refs, num_heads, head_dim, q_tile, t_pad, has_mask, full_mask,
                 cache_kv):
    if has_mask:
        (x_ref, mask_ref, wq_ref, bq_ref, wk_ref, wv_ref, bv_ref,
         wo_ref, bo_ref, out_ref, kb_s, vb_s, o_s) = refs
    else:
        (x_ref, wq_ref, bq_ref, wk_ref, wv_ref, bv_ref,
         wo_ref, bo_ref, out_ref, kb_s, vb_s, o_s) = refs
        mask_ref = None

    qi = pl.program_id(1)

    def build_kv():
        # K/V projections over the full (padded) sequence, bf16 operands with
        # f32 accumulation on the MXU; cached in VMEM scratch as bf16.
        x_kv = x_ref[0]                                             # (T_pad, E)
        k = jnp.dot(x_kv, wk_ref[...], preferred_element_type=jnp.float32)
        v = jnp.dot(x_kv, wv_ref[...], preferred_element_type=jnp.float32) + bv_ref[...]
        kb_s[...] = k.astype(jnp.bfloat16)
        vb_s[...] = v.astype(jnp.bfloat16)

    if cache_kv:
        # qi axis is "arbitrary": qi == 0 runs first for each batch element on
        # its core, so the cache is valid for all subsequent query tiles.
        @pl.when(qi == 0)
        def _():
            build_kv()
    else:
        build_kv()

    # Q projection for this query tile only.  wq / bq are pre-scaled on host.
    q_start = pl.multiple_of(qi * q_tile, q_tile)
    x_q = x_ref[0, pl.ds(q_start, q_tile), :]                       # (tq, E) bf16
    q = jnp.dot(x_q, wq_ref[...], preferred_element_type=jnp.float32) + bq_ref[...]
    qb = q.astype(jnp.bfloat16)

    kb = kb_s[...]                                                  # (T_pad, E) bf16
    vb = vb_s[...]

    if has_mask:
        # Hoisted out of the head loop (JAX does not CSE broadcast_in_dim).
        m = mask_ref[0, 0].astype(jnp.float32)                      # (1|tq, T_pad)
        mask_b = m if full_mask else jnp.broadcast_to(m, (q_tile, t_pad))
    else:
        mask_b = None

    # Static unroll over heads; per-head (tq, T_pad) temporaries die at the
    # o_s store each iteration.  Per-head outputs land at their column offset
    # in one VMEM slab so the out-projection is a single wide MXU matmul.
    for h in range(num_heads):
        sl = slice(h * head_dim, (h + 1) * head_dim)
        # q @ k^T without materializing a transpose (contract last dims).
        s = lax.dot_general(qb[:, sl], kb[:, sl],
                            dimension_numbers=(((1,), (1,)), ((), ())),
                            preferred_element_type=jnp.float32)
        if mask_b is not None:
            s = s + mask_b
        s = s - jnp.max(s, axis=-1, keepdims=True)
        e = jnp.exp(s)
        p = e * pl.reciprocal(jnp.sum(e, axis=-1, keepdims=True), approx=True)
        # dropout(p=self.dropout) in eval mode is identity.
        o_s[:, sl] = jnp.dot(p.astype(jnp.bfloat16), vb[:, sl],
                             preferred_element_type=jnp.float32
                             ).astype(jnp.bfloat16)

    out = jnp.dot(o_s[...], wo_ref[...],
                  preferred_element_type=jnp.float32) + bo_ref[...]
    out_ref[0] = out.astype(out_ref.dtype)


def vitlp_attention(hidden_states, attention_mask, params, *, num_heads):
    """hidden_states: (B, T, E); attention_mask: None, (B,1,1,T) or (B,1,T,T) additive."""
    B, T, E = hidden_states.shape
    head_dim = E // num_heads
    scaling = head_dim ** (-0.5)
    out_dtype = hidden_states.dtype
    out_itemsize = jnp.dtype(out_dtype).itemsize

    cap = _chip_vmem_cap_bytes()
    user_full_mask = attention_mask is not None and attention_mask.shape[2] != 1
    mask_itemsize = 2 if user_full_mask else 4
    q_tile, T_pad = _choose_tiles(T, E, out_itemsize, user_full_mask,
                                  mask_itemsize, cap)
    n_q = T_pad // q_tile
    need_pad = T_pad > T
    has_mask = (attention_mask is not None) or need_pad

    # --- operands -----------------------------------------------------------
    x_b = hidden_states.astype(jnp.bfloat16)
    if need_pad:
        x_b = jnp.pad(x_b, ((0, 0), (0, T_pad - T), (0, 0)))

    mask_rows_blk = 1
    mask = None
    mask_index = None
    if has_mask:
        if attention_mask is None:
            # Only needed to mask padded key positions; broadcast over batch.
            key_valid = jnp.arange(T_pad) < T
            mask = jnp.where(key_valid, 0.0, _NEG_INF).astype(jnp.float32)
            mask = mask.reshape(1, 1, 1, T_pad)
            mask_index = lambda b, qi: (0, 0, 0, 0)
        elif attention_mask.shape[2] == 1:                 # (B, 1, 1, T) key mask
            mask = attention_mask.astype(jnp.float32)
            if need_pad:
                mask = jnp.pad(mask, ((0, 0), (0, 0), (0, 0), (0, T_pad - T)),
                               constant_values=_NEG_INF)
            mask_index = lambda b, qi: (b, 0, 0, 0)
        else:                                              # (B, 1, T, T) full mask
            mask = attention_mask.astype(jnp.bfloat16)     # halve the per-step DMA
            if need_pad:
                mask = jnp.pad(mask,
                               ((0, 0), (0, 0), (0, T_pad - T), (0, T_pad - T)),
                               constant_values=_NEG_INF)
            mask_rows_blk = q_tile
            mask_index = lambda b, qi: (b, 0, qi, 0)

    # bf16 MXU operands (f32 accumulation in-kernel); fold q-scaling into wq/bq.
    wq = (params["wq"] * scaling).astype(jnp.bfloat16)
    bq = (params["bq"] * scaling).astype(jnp.float32).reshape(1, E)
    wk = params["wk"].astype(jnp.bfloat16)
    wv = params["wv"].astype(jnp.bfloat16)
    bv = params["bv"].astype(jnp.float32).reshape(1, E)
    wo = params["wo"].astype(jnp.bfloat16)
    bo = params["bo"].astype(jnp.float32).reshape(1, E)

    # --- grid layout / K-V caching policy ------------------------------------
    if B == 1 and n_q > 1:
        # Keep both grid axes parallel so both v7x TensorCores get work; K/V is
        # recomputed per query tile in this case.
        cache_kv = False
        dims = ("parallel", "parallel")
    else:
        cache_kv = n_q > 1
        dims = ("parallel", "arbitrary" if cache_kv else "parallel")

    # --- specs ----------------------------------------------------------------
    x_spec = pl.BlockSpec((1, T_pad, E), lambda b, qi: (b, 0, 0))
    w_spec = pl.BlockSpec((E, E), lambda b, qi: (0, 0))
    b_spec = pl.BlockSpec((1, E), lambda b, qi: (0, 0))

    in_specs = [x_spec]
    operands = [x_b]
    if has_mask:
        in_specs.append(pl.BlockSpec((1, 1, mask_rows_blk, T_pad), mask_index))
        operands.append(mask)
    in_specs += [w_spec, b_spec, w_spec, w_spec, b_spec, w_spec, b_spec]
    operands += [wq, bq, wk, wv, bv, wo, bo]

    scratch_shapes = [
        pltpu.VMEM((T_pad, E), jnp.bfloat16),   # cached K
        pltpu.VMEM((T_pad, E), jnp.bfloat16),   # cached V
        pltpu.VMEM((q_tile, E), jnp.bfloat16),  # per-head attention output slab
    ]

    vmem_est = _vmem_estimate_bytes(T_pad, E, q_tile, out_itemsize,
                                    mask_rows_blk, mask_itemsize, has_mask)
    vmem_limit = int(min(max(32 * 2**20, int(1.25 * vmem_est)), cap))

    # Advisory cost estimate (K/V projections counted once thanks to caching).
    flops = int(B * (8 * T_pad * E * E + 4 * T_pad * T_pad * E))
    transcendentals = int(B * num_heads * T_pad * T_pad)
    bytes_accessed = int(B * T_pad * E * (2 + out_itemsize)
                         + 4 * E * E * 2 + 3 * E * 4
                         + (mask.size * jnp.dtype(mask.dtype).itemsize
                            if has_mask else 0))
    cost = pl.CostEstimate(flops=flops, transcendentals=transcendentals,
                           bytes_accessed=bytes_accessed)

    kernel = functools.partial(
        _attn_kernel, num_heads=num_heads, head_dim=head_dim, q_tile=q_tile,
        t_pad=T_pad, has_mask=has_mask, full_mask=(mask_rows_blk > 1),
        cache_kv=cache_kv)

    out = pl.pallas_call(
        kernel,
        out_shape=jax.ShapeDtypeStruct((B, T_pad, E), out_dtype),
        grid=(B, n_q),
        in_specs=in_specs,
        out_specs=pl.BlockSpec((1, q_tile, E), lambda b, qi: (b, qi, 0)),
        scratch_shapes=scratch_shapes,
        compiler_params=pltpu.CompilerParams(
            dimension_semantics=dims,
            vmem_limit_bytes=vmem_limit),
        cost_estimate=cost,
    )(*operands)

    return out[:, :T, :] if need_pad else out


def _reference(hidden_states, attention_mask, params, *, num_heads):
    """Plain-JAX f32 reference matching the PyTorch forward."""
    B, T, E = hidden_states.shape
    D = E // num_heads
    scaling = D ** (-0.5)
    x = hidden_states.astype(jnp.float32)
    q = (x @ params["wq"] + params["bq"]) * scaling
    k = x @ params["wk"]
    v = x @ params["wv"] + params["bv"]

    def shape(t):  # (B, T, E) -> (B, H, T, D)
        return t.reshape(B, T, num_heads, D).transpose(0, 2, 1, 3)

    q, k, v = shape(q), shape(k), shape(v)
    w = jnp.einsum("bhtd,bhsd->bhts", q, k)
    if attention_mask is not None:
        w = w + attention_mask.astype(jnp.float32)
    w = jax.nn.softmax(w, axis=-1)
    o = jnp.einsum("bhts,bhsd->bhtd", w, v)
    o = o.transpose(0, 2, 1, 3).reshape(B, T, E)
    return (o @ params["wo"] + params["bo"]).astype(hidden_states.dtype)


def init_params(key, embed_dim):
    ks = jax.random.split(key, 7)
    s = 0.02
    E = embed_dim
    return {
        "wq": s * jax.random.normal(ks[0], (E, E), jnp.float32),
        "bq": s * jax.random.normal(ks[1], (E,), jnp.float32),
        "wk": s * jax.random.normal(ks[2], (E, E), jnp.float32),  # bias=False
        "wv": s * jax.random.normal(ks[3], (E, E), jnp.float32),
        "bv": s * jax.random.normal(ks[4], (E,), jnp.float32),
        "wo": s * jax.random.normal(ks[5], (E, E), jnp.float32),
        "bo": s * jax.random.normal(ks[6], (E,), jnp.float32),
    }


if __name__ == "__main__":
    B, T, E, H = 2, 8, 32, 4
    key = jax.random.PRNGKey(0)
    k_x, k_m, k_p = jax.random.split(key, 3)

    hidden_states = jax.random.normal(k_x, (B, T, E), jnp.float32)
    # Additive key mask like HF: 0 for keep, -1e9 for masked positions.
    keep = jax.random.bernoulli(k_m, 0.9, (B, 1, 1, T))
    attention_mask = jnp.where(keep, 0.0, -1e9).astype(jnp.float32)  # (B,1,1,T)

    params = init_params(k_p, E)

    out = vitlp_attention(hidden_states, attention_mask, params, num_heads=H)
    out = jax.block_until_ready(out)

    ref = _reference(hidden_states, attention_mask, params, num_heads=H)
    assert out.shape == (B, T, E)
    # bf16 MXU operands + approx reciprocal => relaxed tolerance vs f32 reference.
    assert jnp.allclose(out, ref, atol=3e-3, rtol=3e-2), (
        f"mismatch vs reference, max abs diff = {float(jnp.max(jnp.abs(out - ref)))}")

    # Also exercise the no-mask specialization (mask operand dropped entirely).
    out_nm = jax.block_until_ready(
        vitlp_attention(hidden_states, None, params, num_heads=H))
    ref_nm = _reference(hidden_states, None, params, num_heads=H)
    assert jnp.allclose(out_nm, ref_nm, atol=3e-3, rtol=3e-2), (
        f"no-mask mismatch, max abs diff = "
        f"{float(jnp.max(jnp.abs(out_nm - ref_nm)))}")

    print("KERNEL_OK")
</pallas_src>

<mosaic_0001>
module attributes {stable_mosaic.version = 11 : i64} {
  func.func @_attn_kernel(%arg0: i32, %arg1: i32, %arg2: memref<1x8x32xbf16, #tpu.memory_space<vmem>>, %arg3: memref<1x1x1x8xf32, #tpu.memory_space<vmem>>, %arg4: memref<32x32xbf16, #tpu.memory_space<vmem>>, %arg5: memref<1x32xf32, #tpu.memory_space<vmem>>, %arg6: memref<32x32xbf16, #tpu.memory_space<vmem>>, %arg7: memref<32x32xbf16, #tpu.memory_space<vmem>>, %arg8: memref<1x32xf32, #tpu.memory_space<vmem>>, %arg9: memref<32x32xbf16, #tpu.memory_space<vmem>>, %arg10: memref<1x32xf32, #tpu.memory_space<vmem>>, %arg11: memref<1x8x32xf32, #tpu.memory_space<vmem>>, %arg12: memref<8x32xbf16, #tpu.memory_space<vmem>>, %arg13: memref<8x32xbf16, #tpu.memory_space<vmem>>, %arg14: memref<8x32xbf16, #tpu.memory_space<vmem>>) attributes {dimension_semantics = [#tpu.dimension_semantics<parallel>, #tpu.dimension_semantics<parallel>], iteration_bounds = array<i64: 2, 1>, scalar_prefetch = 0 : i64, scratch_operands = 3 : i64, tpu.core_type = #tpu.core_type<tc>, window_params = [{transform_indices = @transform_0, window_bounds = array<i64: 1, 8, 32>}, {transform_indices = @transform_1, window_bounds = array<i64: 1, 1, 1, 8>}, {pipeline_mode = #tpu.pipeline_mode<synchronous>, transform_indices = @transform_2, window_bounds = array<i64: 32, 32>}, {pipeline_mode = #tpu.pipeline_mode<synchronous>, transform_indices = @transform_3, window_bounds = array<i64: 1, 32>}, {pipeline_mode = #tpu.pipeline_mode<synchronous>, transform_indices = @transform_4, window_bounds = array<i64: 32, 32>}, {pipeline_mode = #tpu.pipeline_mode<synchronous>, transform_indices = @transform_5, window_bounds = array<i64: 32, 32>}, {pipeline_mode = #tpu.pipeline_mode<synchronous>, transform_indices = @transform_6, window_bounds = array<i64: 1, 32>}, {pipeline_mode = #tpu.pipeline_mode<synchronous>, transform_indices = @transform_7, window_bounds = array<i64: 32, 32>}, {pipeline_mode = #tpu.pipeline_mode<synchronous>, transform_indices = @transform_8, window_bounds = array<i64: 1, 32>}, {transform_indices = @transform_9, window_bounds = array<i64: 1, 8, 32>}]} {
    %c0 = arith.constant 0 : index
    %c0_0 = arith.constant 0 : index
    %c0_1 = arith.constant 0 : index
    %0 = vector.load %arg2[%c0, %c0_0, %c0_1] : memref<1x8x32xbf16, #tpu.memory_space<vmem>>, vector<1x8x32xbf16>
    %1 = vector.shape_cast %0 : vector<1x8x32xbf16> to vector<8x32xbf16>
    %c0_2 = arith.constant 0 : index
    %c0_3 = arith.constant 0 : index
    %2 = vector.load %arg6[%c0_2, %c0_3] : memref<32x32xbf16, #tpu.memory_space<vmem>>, vector<32x32xbf16>
    %cst = arith.constant dense<0.000000e+00> : vector<8x32xf32>
    %3 = tpu.matmul %1, %2, %cst {dimension_numbers = #tpu.dot_dimension_numbers<[1], [0], [0], [1], [0, 0, 1, 1], [], []>} : vector<8x32xbf16>, vector<32x32xbf16>, vector<8x32xf32> -> vector<8x32xf32>
    %c0_4 = arith.constant 0 : index
    %c0_5 = arith.constant 0 : index
    %4 = vector.load %arg7[%c0_4, %c0_5] : memref<32x32xbf16, #tpu.memory_space<vmem>>, vector<32x32xbf16>
    %cst_6 = arith.constant dense<0.000000e+00> : vector<8x32xf32>
    %5 = tpu.matmul %1, %4, %cst_6 {dimension_numbers = #tpu.dot_dimension_numbers<[1], [0], [0], [1], [0, 0, 1, 1], [], []>} : vector<8x32xbf16>, vector<32x32xbf16>, vector<8x32xf32> -> vector<8x32xf32>
    %c0_7 = arith.constant 0 : index
    %c0_8 = arith.constant 0 : index
    %6 = vector.load %arg8[%c0_7, %c0_8] : memref<1x32xf32, #tpu.memory_space<vmem>>, vector<1x32xf32>
    %7 = vector.broadcast %6 : vector<1x32xf32> to vector<8x32xf32>
    %8 = arith.addf %5, %7 : vector<8x32xf32>
    %9 = arith.truncf %3 : vector<8x32xf32> to vector<8x32xbf16>
    %c0_9 = arith.constant 0 : index
    %c0_10 = arith.constant 0 : index
    %10 = vector.load %arg12[%c0_9, %c0_10] : memref<8x32xbf16, #tpu.memory_space<vmem>>, vector<8x32xbf16>
    tpu.vector_store %arg12[%c0_9, %c0_10], %9 {strides = array<i32>} : memref<8x32xbf16, #tpu.memory_space<vmem>>, vector<8x32xbf16>,
    %11 = arith.truncf %8 : vector<8x32xf32> to vector<8x32xbf16>
    %c0_11 = arith.constant 0 : index
    %c0_12 = arith.constant 0 : index
    %12 = vector.load %arg13[%c0_11, %c0_12] : memref<8x32xbf16, #tpu.memory_space<vmem>>, vector<8x32xbf16>
    tpu.vector_store %arg13[%c0_11, %c0_12], %11 {strides = array<i32>} : memref<8x32xbf16, #tpu.memory_space<vmem>>, vector<8x32xbf16>,
    %c8_i32 = arith.constant 8 : i32
    %13 = arith.muli %arg1, %c8_i32 : i32
    %14 = tpu.assume_multiple %13, 8 : i32
    %c0_13 = arith.constant 0 : index
    %15 = arith.index_cast %14 : i32 to index
    %c0_14 = arith.constant 0 : index
    %16 = vector.load %arg2[%c0_13, %15, %c0_14] : memref<1x8x32xbf16, #tpu.memory_space<vmem>>, vector<1x8x32xbf16>
    %17 = vector.shape_cast %16 : vector<1x8x32xbf16> to vector<8x32xbf16>
    %c0_15 = arith.constant 0 : index
    %c0_16 = arith.constant 0 : index
    %18 = vector.load %arg4[%c0_15, %c0_16] : memref<32x32xbf16, #tpu.memory_space<vmem>>, vector<32x32xbf16>
    %cst_17 = arith.constant dense<0.000000e+00> : vector<8x32xf32>
    %19 = tpu.matmul %17, %18, %cst_17 {dimension_numbers = #tpu.dot_dimension_numbers<[1], [0], [0], [1], [0, 0, 1, 1], [], []>} : vector<8x32xbf16>, vector<32x32xbf16>, vector<8x32xf32> -> vector<8x32xf32>
    %c0_18 = arith.constant 0 : index
    %c0_19 = arith.constant 0 : index
    %20 = vector.load %arg5[%c0_18, %c0_19] : memref<1x32xf32, #tpu.memory_space<vmem>>, vector<1x32xf32>
    %21 = vector.broadcast %20 : vector<1x32xf32> to vector<8x32xf32>
    %22 = arith.addf %19, %21 : vector<8x32xf32>
    %23 = arith.truncf %22 : vector<8x32xf32> to vector<8x32xbf16>
    %c0_20 = arith.constant 0 : index
    %c0_21 = arith.constant 0 : index
    %24 = vector.load %arg12[%c0_20, %c0_21] : memref<8x32xbf16, #tpu.memory_space<vmem>>, vector<8x32xbf16>
    %c0_22 = arith.constant 0 : index
    %c0_23 = arith.constant 0 : index
    %25 = vector.load %arg13[%c0_22, %c0_23] : memref<8x32xbf16, #tpu.memory_space<vmem>>, vector<8x32xbf16>
    %c0_24 = arith.constant 0 : index
    %c0_25 = arith.constant 0 : index
    %c0_26 = arith.constant 0 : index
    %c0_27 = arith.constant 0 : index
    %26 = vector.load %arg3[%c0_24, %c0_25, %c0_26, %c0_27] : memref<1x1x1x8xf32, #tpu.memory_space<vmem>>, vector<1x1x1x8xf32>
    %27 = vector.shape_cast %26 : vector<1x1x1x8xf32> to vector<1x8xf32>
    %28 = vector.shape_cast %27 : vector<1x8xf32> to vector<1x8xf32>
    %29 = vector.broadcast %28 : vector<1x8xf32> to vector<8x8xf32>
    %30 = vector.extract_strided_slice %23 {offsets = [0, 0], sizes = [8, 8], strides = [1, 1]} : vector<8x32xbf16> to vector<8x8xbf16>
    %31 = vector.extract_strided_slice %24 {offsets = [0, 0], sizes = [8, 8], strides = [1, 1]} : vector<8x32xbf16> to vector<8x8xbf16>
    %cst_28 = arith.constant dense<0.000000e+00> : vector<8x8xf32>
    %32 = tpu.matmul %30, %31, %cst_28 {dimension_numbers = #tpu.dot_dimension_numbers<[1], [1], [0], [0], [0, 0, 1, 0], [], []>} : vector<8x8xbf16>, vector<8x8xbf16>, vector<8x8xf32> -> vector<8x8xf32>
    %33 = arith.addf %32, %29 : vector<8x8xf32>
    %cst_29 = arith.constant dense<0xFF800000> : vector<8xf32>
    %34 = vector.multi_reduction <maximumf>, %33, %cst_29 [1] : vector<8x8xf32> to vector<8xf32>
    %35 = vector.shape_cast %34 : vector<8xf32> to vector<8x1xf32>
    %36 = vector.broadcast %35 : vector<8x1xf32> to vector<8x8xf32>
    %37 = arith.subf %33, %36 : vector<8x8xf32>
    %38 = math.exp %37 : vector<8x8xf32>
    %cst_30 = arith.constant dense<0.000000e+00> : vector<8xf32>
    %39 = vector.multi_reduction <add>, %38, %cst_30 [1] : vector<8x8xf32> to vector<8xf32>
    %40 = vector.shape_cast %39 : vector<8xf32> to vector<8x1xf32>
    %41 = tpu.reciprocal %40 {approx = true} : vector<8x1xf32> -> vector<8x1xf32>
    %42 = vector.broadcast %41 : vector<8x1xf32> to vector<8x8xf32>
    %43 = arith.mulf %38, %42 : vector<8x8xf32>
    %44 = arith.truncf %43 : vector<8x8xf32> to vector<8x8xbf16>
    %45 = vector.extract_strided_slice %25 {offsets = [0, 0], sizes = [8, 8], strides = [1, 1]} : vector<8x32xbf16> to vector<8x8xbf16>
    %cst_31 = arith.constant dense<0.000000e+00> : vector<8x8xf32>
    %46 = tpu.matmul %44, %45, %cst_31 {dimension_numbers = #tpu.dot_dimension_numbers<[1], [0], [0], [1], [0, 0, 1, 1], [], []>} : vector<8x8xbf16>, vector<8x8xbf16>, vector<8x8xf32> -> vector<8x8xf32>
    %47 = arith.truncf %46 : vector<8x8xf32> to vector<8x8xbf16>
    %c0_32 = arith.constant 0 : index
    %c0_33 = arith.constant 0 : index
    %48 = vector.load %arg14[%c0_32, %c0_33] : memref<8x32xbf16, #tpu.memory_space<vmem>>, vector<8x8xbf16>
    tpu.vector_store %arg14[%c0_32, %c0_33], %47 {strides = array<i32>} : memref<8x32xbf16, #tpu.memory_space<vmem>>, vector<8x8xbf16>,
    %49 = vector.extract_strided_slice %23 {offsets = [0, 8], sizes = [8, 8], strides = [1, 1]} : vector<8x32xbf16> to vector<8x8xbf16>
    %50 = vector.extract_strided_slice %24 {offsets = [0, 8], sizes = [8, 8], strides = [1, 1]} : vector<8x32xbf16> to vector<8x8xbf16>
    %cst_34 = arith.constant dense<0.000000e+00> : vector<8x8xf32>
    %51 = tpu.matmul %49, %50, %cst_34 {dimension_numbers = #tpu.dot_dimension_numbers<[1], [1], [0], [0], [0, 0, 1, 0], [], []>} : vector<8x8xbf16>, vector<8x8xbf16>, vector<8x8xf32> -> vector<8x8xf32>
    %52 = arith.addf %51, %29 : vector<8x8xf32>
    %cst_35 = arith.constant dense<0xFF800000> : vector<8xf32>
    %53 = vector.multi_reduction <maximumf>, %52, %cst_35 [1] : vector<8x8xf32> to vector<8xf32>
    %54 = vector.shape_cast %53 : vector<8xf32> to vector<8x1xf32>
    %55 = vector.broadcast %54 : vector<8x1xf32> to vector<8x8xf32>
    %56 = arith.subf %52, %55 : vector<8x8xf32>
    %57 = math.exp %56 : vector<8x8xf32>
    %cst_36 = arith.constant dense<0.000000e+00> : vector<8xf32>
    %58 = vector.multi_reduction <add>, %57, %cst_36 [1] : vector<8x8xf32> to vector<8xf32>
    %59 = vector.shape_cast %58 : vector<8xf32> to vector<8x1xf32>
    %60 = tpu.reciprocal %59 {approx = true} : vector<8x1xf32> -> vector<8x1xf32>
    %61 = vector.broadcast %60 : vector<8x1xf32> to vector<8x8xf32>
    %62 = arith.mulf %57, %61 : vector<8x8xf32>
    %63 = arith.truncf %62 : vector<8x8xf32> to vector<8x8xbf16>
    %64 = vector.extract_strided_slice %25 {offsets = [0, 8], sizes = [8, 8], strides = [1, 1]} : vector<8x32xbf16> to vector<8x8xbf16>
    %cst_37 = arith.constant dense<0.000000e+00> : vector<8x8xf32>
    %65 = tpu.matmul %63, %64, %cst_37 {dimension_numbers = #tpu.dot_dimension_numbers<[1], [0], [0], [1], [0, 0, 1, 1], [], []>} : vector<8x8xbf16>, vector<8x8xbf16>, vector<8x8xf32> -> vector<8x8xf32>
    %66 = arith.truncf %65 : vector<8x8xf32> to vector<8x8xbf16>
    %c0_38 = arith.constant 0 : index
    %c8 = arith.constant 8 : index
    %67 = vector.load %arg14[%c0_38, %c8] : memref<8x32xbf16, #tpu.memory_space<vmem>>, vector<8x8xbf16>
    tpu.vector_store %arg14[%c0_38, %c8], %66 {strides = array<i32>} : memref<8x32xbf16, #tpu.memory_space<vmem>>, vector<8x8xbf16>,
    %68 = vector.extract_strided_slice %23 {offsets = [0, 16], sizes = [8, 8], strides = [1, 1]} : vector<8x32xbf16> to vector<8x8xbf16>
    %69 = vector.extract_strided_slice %24 {offsets = [0, 16], sizes = [8, 8], strides = [1, 1]} : vector<8x32xbf16> to vector<8x8xbf16>
    %cst_39 = arith.constant dense<0.000000e+00> : vector<8x8xf32>
    %70 = tpu.matmul %68, %69, %cst_39 {dimension_numbers = #tpu.dot_dimension_numbers<[1], [1], [0], [0], [0, 0, 1, 0], [], []>} : vector<8x8xbf16>, vector<8x8xbf16>, vector<8x8xf32> -> vector<8x8xf32>
    %71 = arith.addf %70, %29 : vector<8x8xf32>
    %cst_40 = arith.constant dense<0xFF800000> : vector<8xf32>
    %72 = vector.multi_reduction <maximumf>, %71, %cst_40 [1] : vector<8x8xf32> to vector<8xf32>
    %73 = vector.shape_cast %72 : vector<8xf32> to vector<8x1xf32>
    %74 = vector.broadcast %73 : vector<8x1xf32> to vector<8x8xf32>
    %75 = arith.subf %71, %74 : vector<8x8xf32>
    %76 = math.exp %75 : vector<8x8xf32>
    %cst_41 = arith.constant dense<0.000000e+00> : vector<8xf32>
    %77 = vector.multi_reduction <add>, %76, %cst_41 [1] : vector<8x8xf32> to vector<8xf32>
    %78 = vector.shape_cast %77 : vector<8xf32> to vector<8x1xf32>
    %79 = tpu.reciprocal %78 {approx = true} : vector<8x1xf32> -> vector<8x1xf32>
    %80 = vector.broadcast %79 : vector<8x1xf32> to vector<8x8xf32>
    %81 = arith.mulf %76, %80 : vector<8x8xf32>
    %82 = arith.truncf %81 : vector<8x8xf32> to vector<8x8xbf16>
    %83 = vector.extract_strided_slice %25 {offsets = [0, 16], sizes = [8, 8], strides = [1, 1]} : vector<8x32xbf16> to vector<8x8xbf16>
    %cst_42 = arith.constant dense<0.000000e+00> : vector<8x8xf32>
    %84 = tpu.matmul %82, %83, %cst_42 {dimension_numbers = #tpu.dot_dimension_numbers<[1], [0], [0], [1], [0, 0, 1, 1], [], []>} : vector<8x8xbf16>, vector<8x8xbf16>, vector<8x8xf32> -> vector<8x8xf32>
    %85 = arith.truncf %84 : vector<8x8xf32> to vector<8x8xbf16>
    %c0_43 = arith.constant 0 : index
    %c16 = arith.constant 16 : index
    %86 = vector.load %arg14[%c0_43, %c16] : memref<8x32xbf16, #tpu.memory_space<vmem>>, vector<8x8xbf16>
    tpu.vector_store %arg14[%c0_43, %c16], %85 {strides = array<i32>} : memref<8x32xbf16, #tpu.memory_space<vmem>>, vector<8x8xbf16>,
    %87 = vector.extract_strided_slice %23 {offsets = [0, 24], sizes = [8, 8], strides = [1, 1]} : vector<8x32xbf16> to vector<8x8xbf16>
    %88 = vector.extract_strided_slice %24 {offsets = [0, 24], sizes = [8, 8], strides = [1, 1]} : vector<8x32xbf16> to vector<8x8xbf16>
    %cst_44 = arith.constant dense<0.000000e+00> : vector<8x8xf32>
    %89 = tpu.matmul %87, %88, %cst_44 {dimension_numbers = #tpu.dot_dimension_numbers<[1], [1], [0], [0], [0, 0, 1, 0], [], []>} : vector<8x8xbf16>, vector<8x8xbf16>, vector<8x8xf32> -> vector<8x8xf32>
    %90 = arith.addf %89, %29 : vector<8x8xf32>
    %cst_45 = arith.constant dense<0xFF800000> : vector<8xf32>
    %91 = vector.multi_reduction <maximumf>, %90, %cst_45 [1] : vector<8x8xf32> to vector<8xf32>
    %92 = vector.shape_cast %91 : vector<8xf32> to vector<8x1xf32>
    %93 = vector.broadcast %92 : vector<8x1xf32> to vector<8x8xf32>
    %94 = arith.subf %90, %93 : vector<8x8xf32>
    %95 = math.exp %94 : vector<8x8xf32>
    %cst_46 = arith.constant dense<0.000000e+00> : vector<8xf32>
    %96 = vector.multi_reduction <add>, %95, %cst_46 [1] : vector<8x8xf32> to vector<8xf32>
    %97 = vector.shape_cast %96 : vector<8xf32> to vector<8x1xf32>
    %98 = tpu.reciprocal %97 {approx = true} : vector<8x1xf32> -> vector<8x1xf32>
    %99 = vector.broadcast %98 : vector<8x1xf32> to vector<8x8xf32>
    %100 = arith.mulf %95, %99 : vector<8x8xf32>
    %101 = arith.truncf %100 : vector<8x8xf32> to vector<8x8xbf16>
    %102 = vector.extract_strided_slice %25 {offsets = [0, 24], sizes = [8, 8], strides = [1, 1]} : vector<8x32xbf16> to vector<8x8xbf16>
    %cst_47 = arith.constant dense<0.000000e+00> : vector<8x8xf32>
    %103 = tpu.matmul %101, %102, %cst_47 {dimension_numbers = #tpu.dot_dimension_numbers<[1], [0], [0], [1], [0, 0, 1, 1], [], []>} : vector<8x8xbf16>, vector<8x8xbf16>, vector<8x8xf32> -> vector<8x8xf32>
    %104 = arith.truncf %103 : vector<8x8xf32> to vector<8x8xbf16>
    %c0_48 = arith.constant 0 : index
    %c24 = arith.constant 24 : index
    %105 = vector.load %arg14[%c0_48, %c24] : memref<8x32xbf16, #tpu.memory_space<vmem>>, vector<8x8xbf16>
    tpu.vector_store %arg14[%c0_48, %c24], %104 {strides = array<i32>} : memref<8x32xbf16, #tpu.memory_space<vmem>>, vector<8x8xbf16>,
    %c0_49 = arith.constant 0 : index
    %c0_50 = arith.constant 0 : index
    %106 = vector.load %arg14[%c0_49, %c0_50] : memref<8x32xbf16, #tpu.memory_space<vmem>>, vector<8x32xbf16>
    %c0_51 = arith.constant 0 : index
    %c0_52 = arith.constant 0 : index
    %107 = vector.load %arg9[%c0_51, %c0_52] : memref<32x32xbf16, #tpu.memory_space<vmem>>, vector<32x32xbf16>
    %cst_53 = arith.constant dense<0.000000e+00> : vector<8x32xf32>
    %108 = tpu.matmul %106, %107, %cst_53 {dimension_numbers = #tpu.dot_dimension_numbers<[1], [0], [0], [1], [0, 0, 1, 1], [], []>} : vector<8x32xbf16>, vector<32x32xbf16>, vector<8x32xf32> -> vector<8x32xf32>
    %c0_54 = arith.constant 0 : index
    %c0_55 = arith.constant 0 : index
    %109 = vector.load %arg10[%c0_54, %c0_55] : memref<1x32xf32, #tpu.memory_space<vmem>>, vector<1x32xf32>
    %110 = vector.broadcast %109 : vector<1x32xf32> to vector<8x32xf32>
    %111 = arith.addf %108, %110 : vector<8x32xf32>
    %c0_56 = arith.constant 0 : index
    %c0_57 = arith.constant 0 : index
    %c0_58 = arith.constant 0 : index
    %112 = vector.load %arg11[%c0_56, %c0_57, %c0_58] : memref<1x8x32xf32, #tpu.memory_space<vmem>>, vector<1x8x32xf32>
    %113 = vector.shape_cast %112 : vector<1x8x32xf32> to vector<8x32xf32>
    %114 = vector.shape_cast %111 : vector<8x32xf32> to vector<1x8x32xf32>
    tpu.vector_store %arg11[%c0_56, %c0_57, %c0_58], %114 {strides = array<i32>} : memref<1x8x32xf32, #tpu.memory_space<vmem>>, vector<1x8x32xf32>,
    return
  }
  func.func @transform_0(%arg0: i32, %arg1: i32) -> (i32, i32, i32) {
    %c0_i32 = arith.constant 0 : i32
    %c0_i32_0 = arith.constant 0 : i32
    %c0_i32_1 = arith.constant 0 : i32
    return %arg0, %c0_i32, %c0_i32_0 : i32, i32, i32
  }
  func.func @transform_1(%arg0: i32, %arg1: i32) -> (i32, i32, i32, i32) {
    %c0_i32 = arith.constant 0 : i32
    %c0_i32_0 = arith.constant 0 : i32
    %c0_i32_1 = arith.constant 0 : i32
    %c0_i32_2 = arith.constant 0 : i32
    return %arg0, %c0_i32, %c0_i32_0, %c0_i32_1 : i32, i32, i32, i32
  }
  func.func @transform_2(%arg0: i32, %arg1: i32) -> (i32, i32) {
    %c0_i32 = arith.constant 0 : i32
    %c0_i32_0 = arith.constant 0 : i32
    %c0_i32_1 = arith.constant 0 : i32
    return %c0_i32, %c0_i32_0 : i32, i32
  }
  func.func @transform_3(%arg0: i32, %arg1: i32) -> (i32, i32) {
    %c0_i32 = arith.constant 0 : i32
    %c0_i32_0 = arith.constant 0 : i32
    %c0_i32_1 = arith.constant 0 : i32
    return %c0_i32, %c0_i32_0 : i32, i32
  }
  func.func @transform_4(%arg0: i32, %arg1: i32) -> (i32, i32) {
    %c0_i32 = arith.constant 0 : i32
    %c0_i32_0 = arith.constant 0 : i32
    %c0_i32_1 = arith.constant 0 : i32
    return %c0_i32, %c0_i32_0 : i32, i32
  }
  func.func @transform_5(%arg0: i32, %arg1: i32) -> (i32, i32) {
    %c0_i32 = arith.constant 0 : i32
    %c0_i32_0 = arith.constant 0 : i32
    %c0_i32_1 = arith.constant 0 : i32
    return %c0_i32, %c0_i32_0 : i32, i32
  }
  func.func @transform_6(%arg0: i32, %arg1: i32) -> (i32, i32) {
    %c0_i32 = arith.constant 0 : i32
    %c0_i32_0 = arith.constant 0 : i32
    %c0_i32_1 = arith.constant 0 : i32
    return %c0_i32, %c0_i32_0 : i32, i32
  }
  func.func @transform_7(%arg0: i32, %arg1: i32) -> (i32, i32) {
    %c0_i32 = arith.constant 0 : i32
    %c0_i32_0 = arith.constant 0 : i32
    %c0_i32_1 = arith.constant 0 : i32
    return %c0_i32, %c0_i32_0 : i32, i32
  }
  func.func @transform_8(%arg0: i32, %arg1: i32) -> (i32, i32) {
    %c0_i32 = arith.constant 0 : i32
    %c0_i32_0 = arith.constant 0 : i32
    %c0_i32_1 = arith.constant 0 : i32
    return %c0_i32, %c0_i32_0 : i32, i32
  }
  func.func @transform_9(%arg0: i32, %arg1: i32) -> (i32, i32, i32) {
    %c0_i32 = arith.constant 0 : i32
    %c0_i32_0 = arith.constant 0 : i32
    return %arg0, %arg1, %c0_i32 : i32, i32, i32
  }
}

</mosaic_0001>

<llo_original>
// kernel: tpu_custom_call.1
$region0: #{tpu_custom_call.1}
  #allocation0 [shape = 'u32[]', space=smem, size = 0x4, offset = 0x4, fixed_abs, tag = 'smem constant byte address 0x4 - core index']
  #allocation1 [shape = 'u32[144,128]{1,0:T(1,128)}', space=vmem, size = 0x12000, scoped, tag = 'internal scratch']
  #allocation2 [shape = 'bf16[8,32]{1,0:T(8,128)(2,1)}', space=vmem, size = 0x800, scoped, tag = 'scratch operand']
  #allocation3 [shape = 'bf16[8,32]{1,0:T(8,128)(2,1)}', space=vmem, size = 0x800, scoped, tag = 'scratch operand']
  #allocation4 [shape = 'bf16[8,32]{1,0:T(8,128)(2,1)}', space=vmem, size = 0x800, scoped, tag = 'scratch operand']
  %s0 = inlined_call_operand.hbm [shape: bf16[2,8,32], index: 0, kind: input, shape index: {}]
  %s1 = inlined_call_operand.vmem [shape: f32[2,1,1,8], index: 1, kind: input, shape index: {}]
  %s2 = inlined_call_operand.hbm [shape: bf16[32,32], index: 2, kind: input, shape index: {}]
  %s3 = inlined_call_operand.hbm [shape: f32[1,32], index: 3, kind: input, shape index: {}]
  %s4 = inlined_call_operand.hbm [shape: bf16[32,32], index: 4, kind: input, shape index: {}]
  %s5 = inlined_call_operand.vmem [shape: bf16[32,32], index: 5, kind: input, shape index: {}]
  %s6 = inlined_call_operand.vmem [shape: f32[1,32], index: 6, kind: input, shape index: {}]
  %s7 = inlined_call_operand.hbm [shape: bf16[32,32], index: 7, kind: input, shape index: {}]
  %s8 = inlined_call_operand.vmem [shape: f32[1,32], index: 8, kind: input, shape index: {}]
  %s9 = inlined_call_operand.hbm [shape: f32[2,8,32], index: 9, kind: output, shape index: {}]
  %s10 = sld [smem:[#allocation0]]
  $region89: #{tpu_custom_call.1} parent=0
    _
  %s12 = ssub.s32 1, %s10
  %s13 = scalar_select 0, %s12, %s10
  $region1: #{tpu_custom_call.1} parent=0
    #allocation5 [shape = 'u8[4096]{0}', space=vmem, size = 0x1000, scoped, tag = 'input window, operand 0']
    #allocation6 [shape = 's32[2]{0}', space=sflag, size = 0x8, scoped, tag = 'scoped memory for tpu_custom_call.1']
    #allocation7 [shape = 's32[2]{0}', space=sflag, size = 0x8, scoped, tag = 'scoped memory for tpu_custom_call.1']
    #allocation8 [shape = 'u8[8192]{0}', space=vmem, size = 0x2000, scoped, tag = 'input window, operand 2, single buffered']
    #allocation9 [shape = 's32[1]{0}', space=sflag, size = 0x4, scoped, tag = 'scoped memory for tpu_custom_call.1']
    #allocation10 [shape = 'u8[512]{0}', space=vmem, size = 0x400, scoped, tag = 'input window, operand 3, single buffered']
    #allocation11 [shape = 'u8[8192]{0}', space=vmem, size = 0x2000, scoped, tag = 'input window, operand 4, single buffered']
    #allocation12 [shape = 's32[1]{0}', space=sflag, size = 0x4, scoped, tag = 'scoped memory for tpu_custom_call.1']
    #allocation13 [shape = 'u8[8192]{0}', space=vmem, size = 0x2000, scoped, tag = 'input window, operand 7, single buffered']
    #allocation14 [shape = 'u8[8192]{0}', space=vmem, size = 0x2000, scoped, tag = 'output window, operand 0']
    %14 = vsyncpa [#allocation6], 0
    %s15 = scalar_lea.sflag [#allocation6], 1
    %16 = vsyncpa %s15, 0
    %17 = vsyncpa [#allocation9], 0
    %18 = vsyncpa [#allocation12], 0
    %19 = vsyncpa [#allocation7], 0
    %s20 = scalar_lea.sflag [#allocation7], 1
    %21 = vsyncpa %s20, 0
    loop: start=0, step=1, limit=4
    $region2: #{tpu_custom_call.1} parent=1 // loop_pre_header
      _
    $region3: #{tpu_custom_call.1} parent=1 // loop_header
      %s23 = sphi 0, %s27
      %p24 = scmp.ge.s32.totalorder %s23, 4
      %s30 = sphi 0, %s42
      %s31 = sphi 0, %s38
      %s32 = sphi 0, %s30
      %s33 = sphi 0, %s31
      %s34 = sphi 0, %s32
      %s35 = sphi 0, %s33
      %s45 = sphi 0, %s47
      %s48 = sphi 0, %s45
      %s49 = sphi 0, %s48
      %s65 = sphi 0, %s49
      %s71 = sphi 0, %s73
      %s74 = sphi 0, %s71
      %s75 = sphi 0, %s74
      %s91 = sphi 0, %s75
      %s95 = sphi 0, %s95
      %s97 = sphi 0, %s95
      %s98 = sphi 0, %s97
      %s112 = sphi 0, %s98
      %s116 = sphi 0, %s116
      %s118 = sphi 0, %s116
      %s119 = sphi 0, %s118
      %s133 = sphi 0, %s119
      %s137 = sphi 0, %s137
      %s139 = sphi 0, %s137
      %s140 = sphi 0, %s139
      %s154 = sphi 0, %s140
      %s158 = sphi 0, %s158
      %s160 = sphi 0, %s158
      %s161 = sphi 0, %s160
      %s175 = sphi 0, %s161
      %s179 = sphi 0, %s179
      %s181 = sphi 0, %s179
      %s182 = sphi 0, %s181
      %s196 = sphi 0, %s182
      %s200 = sphi 0, %s200
      %s202 = sphi 0, %s200
      %s203 = sphi 0, %s202
      %s217 = sphi 0, %s203
      %s221 = sphi 0, %s221
      %s223 = sphi 0, %s221
      %s224 = sphi 0, %s223
      %s238 = sphi 0, %s224
      %s246 = sphi 0, %s248
      %s249 = sphi 0, %s246
      %s250 = sphi 0, %s249
      %s266 = sphi 0, %s250
    $region4: #{tpu_custom_call.1} parent=1 // loop_header_branch
      %26 = sbr.rel (%p24) target = $region8
    $region5: #{tpu_custom_call.1} parent=1 // loop_body
      %s28 = ssub.s32 %s23, 1
      %s29 = ssub.s32 %s23, 2
      %s36 = sadd.s32 1, %s31
      %p37 = scmp.ge.s32.totalorder %s36, 1
      %s38 = scalar_select %p37, 0, %s36
      %s39 = sadd.s32 1, %s30
      %s40 = scalar_select %p37, %s39, %s30
      %p41 = scmp.ge.s32.totalorder %s40, 2
      %s42 = scalar_select %p41, 0, %s40
      %s43 = ssub.s32 %s30, %s42
      %p44 = scmp.eq.s32.totalorder %s43, 0
      %s46 = sadd.s32 %s45, 1
      %s47 = scalar_select %p44, %s45, %s46
      %p50 = pneg %p44
      %p51 = scmp.eq.s32.totalorder %s23, 1
      %p52 = por %p50, %p51
      %p53 = scmp.ne.s32.totalorder %s45, %s48
      %p54 = scmp.eq.s32.totalorder %s23, 0
      %p55 = por %p53, %p54
      %p56 = scmp.ne.s32.totalorder %s45, %s48
      %p57 = scmp.eq.s32.totalorder %s28, 1
      %p58 = por %p56, %p57
      %p59 = scmp.ne.s32.totalorder %s48, %s49
      %p60 = scmp.eq.s32.totalorder %s28, 0
      %p61 = por %p59, %p60
      %p62 = scmp.ne.s32.totalorder %s48, %s49
      %p63 = scmp.eq.s32.totalorder %s29, 1
      %p64 = por %p62, %p63
      %p66 = scmp.ne.s32.totalorder %s49, %s65
      %p67 = scmp.eq.s32.totalorder %s29, 0
      %p68 = por %p66, %p67
      %s69 = ssub.s32 %s30, %s42
      %p70 = scmp.eq.s32.totalorder %s69, 0
      %s72 = sadd.s32 %s71, 1
      %s73 = scalar_select %p70, %s71, %s72
      %p76 = pneg %p70
      %p77 = scmp.eq.s32.totalorder %s23, 1
      %p78 = por %p76, %p77
      %p79 = scmp.ne.s32.totalorder %s71, %s74
      %p80 = scmp.eq.s32.totalorder %s23, 0
      %p81 = por %p79, %p80
      %p82 = scmp.ne.s32.totalorder %s71, %s74
      %p83 = scmp.eq.s32.totalorder %s28, 1
      %p84 = por %p82, %p83
      %p85 = scmp.ne.s32.totalorder %s74, %s75
      %p86 = scmp.eq.s32.totalorder %s28, 0
      %p87 = por %p85, %p86
      %p88 = scmp.ne.s32.totalorder %s74, %s75
      %p89 = scmp.eq.s32.totalorder %s29, 1
      %p90 = por %p88, %p89
      %p92 = scmp.ne.s32.totalorder %s75, %s91
      %p93 = scmp.eq.s32.totalorder %s29, 0
      %p94 = por %p92, %p93
      %s96 = sadd.s32 %s95, 1
      %p99 = scmp.eq.s32.totalorder %s23, 1
      %p100 = scmp.ne.s32.totalorder %s95, %s97
      %p101 = scmp.eq.s32.totalorder %s23, 0
      %p102 = por %p100, %p101
      %p103 = scmp.ne.s32.totalorder %s95, %s97
      %p104 = scmp.eq.s32.totalorder %s28, 1
      %p105 = por %p103, %p104
      %p106 = scmp.ne.s32.totalorder %s97, %s98
      %p107 = scmp.eq.s32.totalorder %s28, 0
      %p108 = por %p106, %p107
      %p109 = scmp.ne.s32.totalorder %s97, %s98
      %p110 = scmp.eq.s32.totalorder %s29, 1
      %p111 = por %p109, %p110
      %p113 = scmp.ne.s32.totalorder %s98, %s112
      %p114 = scmp.eq.s32.totalorder %s29, 0
      %p115 = por %p113, %p114
      %s117 = sadd.s32 %s116, 1
      %p120 = scmp.eq.s32.totalorder %s23, 1
      %p121 = scmp.ne.s32.totalorder %s116, %s118
      %p122 = scmp.eq.s32.totalorder %s23, 0
      %p123 = por %p121, %p122
      %p124 = scmp.ne.s32.totalorder %s116, %s118
      %p125 = scmp.eq.s32.totalorder %s28, 1
      %p126 = por %p124, %p125
      %p127 = scmp.ne.s32.totalorder %s118, %s119
      %p128 = scmp.eq.s32.totalorder %s28, 0
      %p129 = por %p127, %p128
      %p130 = scmp.ne.s32.totalorder %s118, %s119
      %p131 = scmp.eq.s32.totalorder %s29, 1
      %p132 = por %p130, %p131
      %p134 = scmp.ne.s32.totalorder %s119, %s133
      %p135 = scmp.eq.s32.totalorder %s29, 0
      %p136 = por %p134, %p135
      %s138 = sadd.s32 %s137, 1
      %p141 = scmp.eq.s32.totalorder %s23, 1
      %p142 = scmp.ne.s32.totalorder %s137, %s139
      %p143 = scmp.eq.s32.totalorder %s23, 0
      %p144 = por %p142, %p143
      %p145 = scmp.ne.s32.totalorder %s137, %s139
      %p146 = scmp.eq.s32.totalorder %s28, 1
      %p147 = por %p145, %p146
      %p148 = scmp.ne.s32.totalorder %s139, %s140
      %p149 = scmp.eq.s32.totalorder %s28, 0
      %p150 = por %p148, %p149
      %p151 = scmp.ne.s32.totalorder %s139, %s140
      %p152 = scmp.eq.s32.totalorder %s29, 1
      %p153 = por %p151, %p152
      %p155 = scmp.ne.s32.totalorder %s140, %s154
      %p156 = scmp.eq.s32.totalorder %s29, 0
      %p157 = por %p155, %p156
      %s159 = sadd.s32 %s158, 1
      %p162 = scmp.eq.s32.totalorder %s23, 1
      %p163 = scmp.ne.s32.totalorder %s158, %s160
      %p164 = scmp.eq.s32.totalorder %s23, 0
      %p165 = por %p163, %p164
      %p166 = scmp.ne.s32.totalorder %s158, %s160
      %p167 = scmp.eq.s32.totalorder %s28, 1
      %p168 = por %p166, %p167
      %p169 = scmp.ne.s32.totalorder %s160, %s161
      %p170 = scmp.eq.s32.totalorder %s28, 0
      %p171 = por %p169, %p170
      %p172 = scmp.ne.s32.totalorder %s160, %s161
      %p173 = scmp.eq.s32.totalorder %s29, 1
      %p174 = por %p172, %p173
      %p176 = scmp.ne.s32.totalorder %s161, %s175
      %p177 = scmp.eq.s32.totalorder %s29, 0
      %p178 = por %p176, %p177
      %s180 = sadd.s32 %s179, 1
      %p183 = scmp.eq.s32.totalorder %s23, 1
      %p184 = scmp.ne.s32.totalorder %s179, %s181
      %p185 = scmp.eq.s32.totalorder %s23, 0
      %p186 = por %p184, %p185
      %p187 = scmp.ne.s32.totalorder %s179, %s181
      %p188 = scmp.eq.s32.totalorder %s28, 1
      %p189 = por %p187, %p188
      %p190 = scmp.ne.s32.totalorder %s181, %s182
      %p191 = scmp.eq.s32.totalorder %s28, 0
      %p192 = por %p190, %p191
      %p193 = scmp.ne.s32.totalorder %s181, %s182
      %p194 = scmp.eq.s32.totalorder %s29, 1
      %p195 = por %p193, %p194
      %p197 = scmp.ne.s32.totalorder %s182, %s196
      %p198 = scmp.eq.s32.totalorder %s29, 0
      %p199 = por %p197, %p198
      %s201 = sadd.s32 %s200, 1
      %p204 = scmp.eq.s32.totalorder %s23, 1
      %p205 = scmp.ne.s32.totalorder %s200, %s202
      %p206 = scmp.eq.s32.totalorder %s23, 0
      %p207 = por %p205, %p206
      %p208 = scmp.ne.s32.totalorder %s200, %s202
      %p209 = scmp.eq.s32.totalorder %s28, 1
      %p210 = por %p208, %p209
      %p211 = scmp.ne.s32.totalorder %s202, %s203
      %p212 = scmp.eq.s32.totalorder %s28, 0
      %p213 = por %p211, %p212
      %p214 = scmp.ne.s32.totalorder %s202, %s203
      %p215 = scmp.eq.s32.totalorder %s29, 1
      %p216 = por %p214, %p215
      %p218 = scmp.ne.s32.totalorder %s203, %s217
      %p219 = scmp.eq.s32.totalorder %s29, 0
      %p220 = por %p218, %p219
      %s222 = sadd.s32 %s221, 1
      %p225 = scmp.eq.s32.totalorder %s23, 1
      %p226 = scmp.ne.s32.totalorder %s221, %s223
      %p227 = scmp.eq.s32.totalorder %s23, 0
      %p228 = por %p226, %p227
      %p229 = scmp.ne.s32.totalorder %s221, %s223
      %p230 = scmp.eq.s32.totalorder %s28, 1
      %p231 = por %p229, %p230
      %p232 = scmp.ne.s32.totalorder %s223, %s224
      %p233 = scmp.eq.s32.totalorder %s28, 0
      %p234 = por %p232, %p233
      %p235 = scmp.ne.s32.totalorder %s223, %s224
      %p236 = scmp.eq.s32.totalorder %s29, 1
      %p237 = por %p235, %p236
      %p239 = scmp.ne.s32.totalorder %s224, %s238
      %p240 = scmp.eq.s32.totalorder %s29, 0
      %p241 = por %p239, %p240
      %s242 = ssub.s32 %s30, %s42
      %s243 = ssub.s32 %s31, %s38
      %s244 = sor.u32 %s242, %s243
      %p245 = scmp.eq.s32.totalorder %s244, 0
      %s247 = sadd.s32 %s246, 1
      %s248 = scalar_select %p245, %s246, %s247
      %p251 = pneg %p245
      %p252 = scmp.eq.s32.totalorder %s23, 1
      %p253 = por %p251, %p252
      %p254 = scmp.ne.s32.totalorder %s246, %s249
      %p255 = scmp.eq.s32.totalorder %s23, 0
      %p256 = por %p254, %p255
      %p257 = scmp.ne.s32.totalorder %s246, %s249
      %p258 = scmp.eq.s32.totalorder %s28, 1
      %p259 = por %p257, %p258
      %p260 = scmp.ne.s32.totalorder %s249, %s250
      %p261 = scmp.eq.s32.totalorder %s28, 0
      %p262 = por %p260, %p261
      %p263 = scmp.ne.s32.totalorder %s249, %s250
      %p264 = scmp.eq.s32.totalorder %s29, 1
      %p265 = por %p263, %p264
      %p267 = scmp.ne.s32.totalorder %s250, %s266
      %p268 = scmp.eq.s32.totalorder %s29, 0
      %p269 = por %p267, %p268
      %p270 = scmp.le.s32.totalorder 1, %s23
      %p271 = scmp.lt.s32.totalorder %s23, 3
      %p272 = pnand %p270, %p271
      %p273 = pneg %p272
      // Predicated region
      $region9: #{tpu_custom_call.1} parent=5 // pred_check
        _
      $region10: #{tpu_custom_call.1} parent=5 // pred_check_branch
        %275 = sbr.rel (%p272) target = $region12
      $region11: #{tpu_custom_call.1} parent=5 // pred_region
        %s276 = ssub.s32 %s23, 1
        // Predicated region
        $region13: #{tpu_custom_call.1} parent=11 // pred_check
          %p277 = pneg %p108
        $region14: #{tpu_custom_call.1} parent=11 // pred_check_branch
          %279 = sbr.rel (%p277) target = $region16
        $region15: #{tpu_custom_call.1} parent=11 // pred_region
          %s281 = ssub.s32 256, 256
          %282 = vsyncadd [#allocation9], %s281
          %s283 = sshll.u32 [#allocation8], 4
          %s284 = int_to_ptr.vmem [resolvable:$true] %s283
          %289 = dma.hbm_to_vmem [thread:$0]  %s2, 256, %s284, [#allocation9], 64, 64, 4
        $region16: #{tpu_custom_call.1} parent=11 // pred_fallthru
          _
        // Predicated region
        $region17: #{tpu_custom_call.1} parent=11 // pred_check
          %p290 = pneg %p129
        $region18: #{tpu_custom_call.1} parent=11 // pred_check_branch
          %292 = sbr.rel (%p290) target = $region20
        $region19: #{tpu_custom_call.1} parent=11 // pred_region
          %s294 = ssub.s32 16, 16
          %295 = vsyncadd [#allocation9], %s294
          %s297 = sshll.u32 [#allocation10], 4
          %s298 = int_to_ptr.vmem [resolvable:$true] %s297
          %300 = dma.hbm_to_vmem [thread:$0]  %s3, 16, %s298, [#allocation9]
        $region20: #{tpu_custom_call.1} parent=11 // pred_fallthru
          _
        // Predicated region
        $region21: #{tpu_custom_call.1} parent=11 // pred_check
          %p301 = pneg %p150
        $region22: #{tpu_custom_call.1} parent=11 // pred_check_branch
          %303 = sbr.rel (%p301) target = $region24
        $region23: #{tpu_custom_call.1} parent=11 // pred_region
          %s305 = ssub.s32 256, 256
          %306 = vsyncadd [#allocation12], %s305
          %s307 = sshll.u32 [#allocation11], 4
          %s308 = int_to_ptr.vmem [resolvable:$true] %s307
          %313 = dma.hbm_to_vmem [thread:$0]  %s4, 256, %s308, [#allocation12], 64, 64, 4
        $region24: #{tpu_custom_call.1} parent=11 // pred_fallthru
          _
        // Predicated region
        $region25: #{tpu_custom_call.1} parent=11 // pred_check
          %p314 = pneg %p171
        $region26: #{tpu_custom_call.1} parent=11 // pred_check_branch
          %316 = sbr.rel (%p314) target = $region28
        $region27: #{tpu_custom_call.1} parent=11 // pred_region
          _
        $region28: #{tpu_custom_call.1} parent=11 // pred_fallthru
          _
        // Predicated region
        $region29: #{tpu_custom_call.1} parent=11 // pred_check
          %p317 = pneg %p192
        $region30: #{tpu_custom_call.1} parent=11 // pred_check_branch
          %319 = sbr.rel (%p317) target = $region32
        $region31: #{tpu_custom_call.1} parent=11 // pred_region
          _
        $region32: #{tpu_custom_call.1} parent=11 // pred_fallthru
          _
        // Predicated region
        $region33: #{tpu_custom_call.1} parent=11 // pred_check
          %p320 = pneg %p213
        $region34: #{tpu_custom_call.1} parent=11 // pred_check_branch
          %322 = sbr.rel (%p320) target = $region36
        $region35: #{tpu_custom_call.1} parent=11 // pred_region
          %s324 = ssub.s32 256, 256
          %325 = vsyncadd [#allocation12], %s324
          %s326 = sshll.u32 [#allocation13], 4
          %s327 = int_to_ptr.vmem [resolvable:$true] %s326
          %332 = dma.hbm_to_vmem [thread:$0]  %s7, 256, %s327, [#allocation12], 64, 64, 4
        $region36: #{tpu_custom_call.1} parent=11 // pred_fallthru
          _
        // Predicated region
        $region37: #{tpu_custom_call.1} parent=11 // pred_check
          %p333 = pneg %p234
        $region38: #{tpu_custom_call.1} parent=11 // pred_check_branch
          %335 = sbr.rel (%p333) target = $region40
        $region39: #{tpu_custom_call.1} parent=11 // pred_region
          _
        $region40: #{tpu_custom_call.1} parent=11 // pred_fallthru
          _
      $region12: #{tpu_custom_call.1} parent=5 // pred_fallthru
        _
      %p336 = scmp.lt.s32.totalorder %s23, 2
      // Predicated region
      $region41: #{tpu_custom_call.1} parent=5 // pred_check
        %p337 = pneg %p336
      $region42: #{tpu_custom_call.1} parent=5 // pred_check_branch
        %339 = sbr.rel (%p337) target = $region44
      $region43: #{tpu_custom_call.1} parent=5 // pred_region
        // Predicated region
        $region45: #{tpu_custom_call.1} parent=43 // pred_check
          %p340 = pneg %p55
        $region46: #{tpu_custom_call.1} parent=43 // pred_check_branch
          %342 = sbr.rel (%p340) target = $region48
        $region47: #{tpu_custom_call.1} parent=43 // pred_region
          %s343 = sand.u32 %s45, 1
          %s344 = scalar_lea.sflag [#allocation6], %s343
          %s345 = sand.u32 %s45, 1
          %s346 = smul.addr %s345, 4
          %s347 = scalar_lea.vmem [#allocation5], %s346
          %s349 = ssub.s32 64, 64
          %350 = vsyncadd %s344, %s349
          %s351 = smul.addr %s30, 64
          %s352 = scalar_lea.hbm %s0, %s351
          %s354 = sshll.u32 %s347, 4
          %s355 = int_to_ptr.vmem [resolvable:$true] %s354
          %357 = dma.hbm_to_vmem [thread:$0]  %s352, 64, %s355, %s344
        $region48: #{tpu_custom_call.1} parent=43 // pred_fallthru
          _
        // Predicated region
        $region49: #{tpu_custom_call.1} parent=43 // pred_check
          %p358 = pneg %p81
        $region50: #{tpu_custom_call.1} parent=43 // pred_check_branch
          %360 = sbr.rel (%p358) target = $region52
        $region51: #{tpu_custom_call.1} parent=43 // pred_region
          %p361 = scmp.lt.s32.totalorder %s30, 1
          %s362 = scalar_select %p361, %s30, 1
          %s363 = scalar_lea.vmem %s1, %s362
        $region52: #{tpu_custom_call.1} parent=43 // pred_fallthru
          _
      $region44: #{tpu_custom_call.1} parent=5 // pred_fallthru
        _
      %p364 = scmp.le.s32.totalorder 1, %s23
      %p365 = scmp.lt.s32.totalorder %s23, 3
      %p366 = pnand %p364, %p365
      %p367 = pneg %p366
      // Predicated region
      $region53: #{tpu_custom_call.1} parent=5 // pred_check
        _
      $region54: #{tpu_custom_call.1} parent=5 // pred_check_branch
        %369 = sbr.rel (%p366) target = $region56
      $region55: #{tpu_custom_call.1} parent=5 // pred_region
        %s370 = ssub.s32 %s23, 1
        %s371 = sand.u32 %s48, 1
        %s372 = scalar_lea.sflag [#allocation6], %s371
        %s373 = sand.u32 %s48, 1
        %s374 = smul.addr %s373, 4
        %s375 = scalar_lea.vmem [#allocation5], %s374
        // Predicated region
        $region57: #{tpu_custom_call.1} parent=55 // pred_check
          %p376 = pneg %p61
        $region58: #{tpu_custom_call.1} parent=55 // pred_check_branch
          %378 = sbr.rel (%p376) target = $region60
        $region59: #{tpu_custom_call.1} parent=55 // pred_region
          %379 = dma.done %s372, 64
        $region60: #{tpu_custom_call.1} parent=55 // pred_fallthru
          _
        // Predicated region
        $region61: #{tpu_custom_call.1} parent=55 // pred_check
          %p380 = pneg %p108
        $region62: #{tpu_custom_call.1} parent=55 // pred_check_branch
          %382 = sbr.rel (%p380) target = $region64
        $region63: #{tpu_custom_call.1} parent=55 // pred_region
          %383 = dma.done [#allocation9], 256
        $region64: #{tpu_custom_call.1} parent=55 // pred_fallthru
          _
        // Predicated region
        $region65: #{tpu_custom_call.1} parent=55 // pred_check
          %p384 = pneg %p129
        $region66: #{tpu_custom_call.1} parent=55 // pred_check_branch
          %386 = sbr.rel (%p384) target = $region68
        $region67: #{tpu_custom_call.1} parent=55 // pred_region
          %387 = dma.done [#allocation9], 16
        $region68: #{tpu_custom_call.1} parent=55 // pred_fallthru
          _
        // Predicated region
        $region69: #{tpu_custom_call.1} parent=55 // pred_check
          %p388 = pneg %p150
        $region70: #{tpu_custom_call.1} parent=55 // pred_check_branch
          %390 = sbr.rel (%p388) target = $region72
        $region71: #{tpu_custom_call.1} parent=55 // pred_region
          %391 = dma.done [#allocation12], 256
        $region72: #{tpu_custom_call.1} parent=55 // pred_fallthru
          _
        // Predicated region
        $region73: #{tpu_custom_call.1} parent=55 // pred_check
          %p392 = pneg %p213
        $region74: #{tpu_custom_call.1} parent=55 // pred_check_branch
          %394 = sbr.rel (%p392) target = $region76
        $region75: #{tpu_custom_call.1} parent=55 // pred_region
          %395 = dma.done [#allocation12], 256
        $region76: #{tpu_custom_call.1} parent=55 // pred_fallthru
          _
        %s396 = sand.u32 %s48, 1
        %s397 = scalar_lea.sflag [#allocation6], %s396
        %s398 = sand.u32 %s48, 1
        %s399 = smul.addr %s398, 4
        %s400 = scalar_lea.vmem [#allocation5], %s399
        %p401 = pneg %p61
        %p402 = pneg %p58
        %p403 = scmp.lt.s32.totalorder %s32, 1
        %s404 = scalar_select %p403, %s32, 1
        %s405 = scalar_lea.vmem %s1, %s404
        %p406 = pneg %p87
        %p407 = pneg %p84
        %p408 = pneg %p108
        %p409 = pneg %p105
        %p410 = pneg %p129
        %p411 = pneg %p126
        %p412 = pneg %p150
        %p413 = pneg %p147
        %p414 = pneg %p171
        %p415 = pneg %p168
        %p416 = pneg %p192
        %p417 = pneg %p189
        %p418 = pneg %p213
        %p419 = pneg %p210
        %p420 = pneg %p234
        %p421 = pneg %p231
        %p422 = pneg %p262
        %p423 = pneg %p259
        %s424 = sand.u32 %s249, 1
        %s425 = scalar_lea.sflag [#allocation7], %s424
        %s426 = sand.u32 %s249, 1
        %s427 = smul.addr %s426, 8
        %s428 = scalar_lea.vmem [#allocation14], %s427
        %p429 = scmp.lt.s32.totalorder %s32, 1
        %s430 = scalar_select %p429, %s32, 1
        %s431 = scalar_lea.vmem %s1, %s430
        %v433 = vld [vmem:[%s375] sm:$0xf]
        %v434 = vld [vmem:[#allocation11] sm:$0xf]
        %v435 = vld [vmem:[#allocation11 + $0x4] sm:$0xf]
        %v436 = vld [vmem:[#allocation11 + $0x8] sm:$0xf]
        %v437 = vld [vmem:[#allocation11 + $0xc] sm:$0xf]
        %v442 = vunpack.c.l.b16 %v434
        %v443 = vunpack.c.l.b16 %v435
        %v444 = vunpack.c.l.b16 %v436
        %v445 = vunpack.c.l.b16 %v437
        %v446 = vpack.c.b16 %v443, %v442
        %v447 = vpack.c.b16 %v445, %v444
        %vm450 = vcmask 261120
        %v452 = vsel %vm450, %v433, 0
        %454 = vmatprep.subr.bf16.mxu0 0
        %455 = vmatpush1.bf16.msra.mxu0 %v446
        %456 = vmatprep.subr.bf16.mxu0 0
        %457 = vmatpush1.bf16.msra.mxu0 %v447
        %458 = vmatprep.subr.bf16.mxu0 0
        %459 = vmatpush1.bf16.msra.mxu0 0
        %460 = vmatprep.subr.bf16.mxu0 0
        %461 = vmatpush1.bf16.msra.mxu0 0
        %462 = vmatprep.subr.bf16.mxu0 0
        %463 = vmatpush1.bf16.msra.mxu0 0
        %464 = vmatprep.subr.bf16.mxu0 0
        %465 = vmatpush1.bf16.msra.mxu0 0
        %466 = vmatprep.subr.bf16.mxu0 0
        %467 = vmatpush1.bf16.msra.mxu0 0
        %468 = vmatprep.subr.bf16.mxu0 0
        %469 = vmatpush1.bf16.msra.mxu0 0
        %470 = vmatprep.subr.bf16.mxu0 0
        %471 = vmatpush1.bf16.msra.mxu0 0
        %472 = vmatprep.subr.bf16.mxu0 0
        %473 = vmatpush1.bf16.msra.mxu0 0
        %474 = vmatprep.subr.bf16.mxu0 0
        %475 = vmatpush1.bf16.msra.mxu0 0
        %476 = vmatprep.subr.bf16.mxu0 0
        %477 = vmatpush1.bf16.msra.mxu0 0
        %478 = vmatprep.subr.bf16.mxu0 0
        %479 = vmatpush1.bf16.msra.mxu0 0
        %480 = vmatprep.subr.bf16.mxu0 0
        %481 = vmatpush1.bf16.msra.mxu0 0
        %482 = vmatprep.subr.bf16.mxu0 0
        %483 = vmatpush1.bf16.msra.mxu0 0
        %484 = vmatprep.subr.bf16.mxu0 0
        %485 = vmatpush1.bf16.msra.mxu0 0
        %486 = vmatprep.mubr.bf16.mxu0 0
        %487 = vmatmul.mubr.bf16.gmra.mrb[0].mxu0 %v452
        %v488 = vpop.f32.mrb[0].mxu0
        %v489 = vadd.f32 0.0, %v488
        %v490 = vpop.f32.mrb[0].mxu0
        %v491 = vpop.f32.mrb[0].mxu0
        %v492 = vpop.f32.mrb[0].mxu0
        %493 = vdwg.mxu0
        %v494 = vld [vmem:[%s5] sm:$0xf]
        %v495 = vld [vmem:[%s5 + $0x4] sm:$0xf]
        %v496 = vld [vmem:[%s5 + $0x8] sm:$0xf]
        %v497 = vld [vmem:[%s5 + $0xc] sm:$0xf]
        %v498 = vld [vmem:[%s6] sm:$0x1]
        %v500 = vlaneseq
        %v501 = vshrl.u32 %v500, 7
        %v502 = vsub.s32 0, %v501
        %v503 = vrot.slane %v498, %v502
        %v509 = vunpack.c.l.b16 %v494
        %v510 = vunpack.c.l.b16 %v495
        %v511 = vunpack.c.l.b16 %v496
        %v512 = vunpack.c.l.b16 %v497
        %v513 = vpack.c.b16 %v510, %v509
        %v514 = vpack.c.b16 %v512, %v511
        %517 = vmatprep.subr.bf16.mxu0 0
        %518 = vmatpush1.bf16.msra.mxu0 %v513
        %519 = vmatprep.subr.bf16.mxu0 0
        %520 = vmatpush1.bf16.msra.mxu0 %v514
        %521 = vmatprep.subr.bf16.mxu0 0
        %522 = vmatpush1.bf16.msra.mxu0 0
        %523 = vmatprep.subr.bf16.mxu0 0
        %524 = vmatpush1.bf16.msra.mxu0 0
        %525 = vmatprep.subr.bf16.mxu0 0
        %526 = vmatpush1.bf16.msra.mxu0 0
        %527 = vmatprep.subr.bf16.mxu0 0
        %528 = vmatpush1.bf16.msra.mxu0 0
        %529 = vmatprep.subr.bf16.mxu0 0
        %530 = vmatpush1.bf16.msra.mxu0 0
        %531 = vmatprep.subr.bf16.mxu0 0
        %532 = vmatpush1.bf16.msra.mxu0 0
        %533 = vmatprep.subr.bf16.mxu0 0
        %534 = vmatpush1.bf16.msra.mxu0 0
        %535 = vmatprep.subr.bf16.mxu0 0
        %536 = vmatpush1.bf16.msra.mxu0 0
        %537 = vmatprep.subr.bf16.mxu0 0
        %538 = vmatpush1.bf16.msra.mxu0 0
        %539 = vmatprep.subr.bf16.mxu0 0
        %540 = vmatpush1.bf16.msra.mxu0 0
        %541 = vmatprep.subr.bf16.mxu0 0
        %542 = vmatpush1.bf16.msra.mxu0 0
        %543 = vmatprep.subr.bf16.mxu0 0
        %544 = vmatpush1.bf16.msra.mxu0 0
        %545 = vmatprep.subr.bf16.mxu0 0
        %546 = vmatpush1.bf16.msra.mxu0 0
        %547 = vmatprep.subr.bf16.mxu0 0
        %548 = vmatpush1.bf16.msra.mxu0 0
        %549 = vmatprep.mubr.bf16.mxu0 0
        %550 = vmatmul.mubr.bf16.gmra.mrb[0].mxu0 %v452
        %v551 = vpop.f32.mrb[0].mxu0
        %v552 = vadd.f32 %v503, %v551
        %v553 = vpop.f32.mrb[0].mxu0
        %v554 = vpop.f32.mrb[0].mxu0
        %v555 = vpop.f32.mrb[0].mxu0
        %556 = vdwg.mxu0
        %v557 = vpack.c.bf16 %v489, %v489
        %vm558 = vcmask 257024
        %559 = vst.msk [vmem:[#allocation2] sm:$0xf] %vm558, %v557
        %v560 = vpack.c.bf16 %v552, %v552
        %561 = vst.msk [vmem:[#allocation3] sm:$0xf] %vm558, %v560
        %s562 = smul.u32 %s33, 8
        %s563 = sshra.s32 %s562, 3
        %s564 = sand.u32 %s562, 7
        %s565 = smul.addr %s563, 4
        %s566 = scalar_lea.vmem %s375, %s565 [#allocation5]
        %v567 = vld [vmem:[%s566] sm:$0xf]
        %v568 = vld [vmem:[#allocation8] sm:$0xf]
        %v569 = vld [vmem:[#allocation8 + $0x4] sm:$0xf]
        %v570 = vld [vmem:[#allocation8 + $0x8] sm:$0xf]
        %v571 = vld [vmem:[#allocation8 + $0xc] sm:$0xf]
        %v572 = vld [vmem:[#allocation10] sm:$0x1]
        %v574 = vlaneseq
        %v575 = vshrl.u32 %v574, 7
        %v576 = vsub.s32 0, %v575
        %v577 = vrot.slane %v572, %v576
        %v583 = vunpack.c.l.b16 %v568
        %v584 = vunpack.c.l.b16 %v569
        %v585 = vunpack.c.l.b16 %v570
        %v586 = vunpack.c.l.b16 %v571
        %v587 = vpack.c.b16 %v584, %v583
        %v588 = vpack.c.b16 %v586, %v585
        %v592 = vsel %vm450, %v567, 0
        %594 = vmatprep.subr.bf16.mxu0 0
        %595 = vmatpush1.bf16.msra.mxu0 %v587
        %596 = vmatprep.subr.bf16.mxu0 0
        %597 = vmatpush1.bf16.msra.mxu0 %v588
        %598 = vmatprep.subr.bf16.mxu0 0
        %599 = vmatpush1.bf16.msra.mxu0 0
        %600 = vmatprep.subr.bf16.mxu0 0
        %601 = vmatpush1.bf16.msra.mxu0 0
        %602 = vmatprep.subr.bf16.mxu0 0
        %603 = vmatpush1.bf16.msra.mxu0 0
        %604 = vmatprep.subr.bf16.mxu0 0
        %605 = vmatpush1.bf16.msra.mxu0 0
        %606 = vmatprep.subr.bf16.mxu0 0
        %607 = vmatpush1.bf16.msra.mxu0 0
        %608 = vmatprep.subr.bf16.mxu0 0
        %609 = vmatpush1.bf16.msra.mxu0 0
        %610 = vmatprep.subr.bf16.mxu0 0
        %611 = vmatpush1.bf16.msra.mxu0 0
        %612 = vmatprep.subr.bf16.mxu0 0
        %613 = vmatpush1.bf16.msra.mxu0 0
        %614 = vmatprep.subr.bf16.mxu0 0
        %615 = vmatpush1.bf16.msra.mxu0 0
        %616 = vmatprep.subr.bf16.mxu0 0
        %617 = vmatpush1.bf16.msra.mxu0 0
        %618 = vmatprep.subr.bf16.mxu0 0
        %619 = vmatpush1.bf16.msra.mxu0 0
        %620 = vmatprep.subr.bf16.mxu0 0
        %621 = vmatpush1.bf16.msra.mxu0 0
        %622 = vmatprep.subr.bf16.mxu0 0
        %623 = vmatpush1.bf16.msra.mxu0 0
        %624 = vmatprep.subr.bf16.mxu0 0
        %625 = vmatpush1.bf16.msra.mxu0 0
        %626 = vmatprep.mubr.bf16.mxu0 0
        %627 = vmatmul.mubr.bf16.gmra.mrb[0].mxu0 %v592
        %v628 = vpop.f32.mrb[0].mxu0
        %v629 = vadd.f32 %v577, %v628
        %v630 = vpop.f32.mrb[0].mxu0
        %v631 = vpop.f32.mrb[0].mxu0
        %v632 = vpop.f32.mrb[0].mxu0
        %633 = vdwg.mxu0
        %v634 = vpack.c.bf16 %v629, %v629
        %v635 = vld [vmem:[#allocation2] sm:$0xf]
        %v636 = vld [vmem:[#allocation3] sm:$0xf]
        %v637 = vld [vmem:[%s431] sm:$0x1]
        %v639 = vlaneseq
        %v640 = vshrl.u32 %v639, 7
        %v641 = vsub.s32 0, %v640
        %v642 = vrot.slane %v637, %v641
        %vm644 = vcmask 64512
        %v646 = vsel %vm644, %v634, 0
        %v649 = vsel %vm644, %v635, 0
        %651 = vmatprep.subr.bf16.mxu0 0
        %652 = vmatpush1.bf16.xpose.msra.mxu0 %v649
        %653 = vmatprep.subr.bf16.mxu0 0
        %654 = vmatpush1.bf16.xpose.msra.mxu0 0
        %655 = vmatprep.subr.bf16.mxu0 0
        %656 = vmatpush1.bf16.xpose.msra.mxu0 0
        %657 = vmatprep.subr.bf16.mxu0 0
        %658 = vmatpush1.bf16.xpose.msra.mxu0 0
        %659 = vmatprep.subr.bf16.mxu0 0
        %660 = vmatpush1.bf16.xpose.msra.mxu0 0
        %661 = vmatprep.subr.bf16.mxu0 0
        %662 = vmatpush1.bf16.xpose.msra.mxu0 0
        %663 = vmatprep.subr.bf16.mxu0 0
        %664 = vmatpush1.bf16.xpose.msra.mxu0 0
        %665 = vmatprep.subr.bf16.mxu0 0
        %666 = vmatpush1.bf16.xpose.msra.mxu0 0
        %667 = vmatprep.subr.bf16.mxu0 0
        %668 = vmatpush1.bf16.xpose.msra.mxu0 0
        %669 = vmatprep.subr.bf16.mxu0 0
        %670 = vmatpush1.bf16.xpose.msra.mxu0 0
        %671 = vmatprep.subr.bf16.mxu0 0
        %672 = vmatpush1.bf16.xpose.msra.mxu0 0
        %673 = vmatprep.subr.bf16.mxu0 0
        %674 = vmatpush1.bf16.xpose.msra.mxu0 0
        %675 = vmatprep.subr.bf16.mxu0 0
        %676 = vmatpush1.bf16.xpose.msra.mxu0 0
        %677 = vmatprep.subr.bf16.mxu0 0
        %678 = vmatpush1.bf16.xpose.msra.mxu0 0
        %679 = vmatprep.subr.bf16.mxu0 0
        %680 = vmatpush1.bf16.xpose.msra.mxu0 0
        %681 = vmatprep.subr.bf16.mxu0 0
        %682 = vmatpush1.bf16.xpose.msra.mxu0 0
        %683 = vmatprep.mubr.bf16.mxu0 0
        %684 = vmatmul.mubr.bf16.gmra.mrb[0].mxu0 %v646
        %v685 = vpop.f32.mrb[0].mxu0
        %v686 = vadd.f32 %v642, %v685
        %v687 = vpop.f32.mrb[0].mxu0
        %v688 = vpop.f32.mrb[0].mxu0
        %v689 = vpop.f32.mrb[0].mxu0
        %690 = vdwg.mxu0
        %v691 = vsel %vm644, %v686, -inf
        %692 = vmax.xlane.f32.xlu0 %v691
        %v693 = vpop.xlane.xlu0 %692
        %v694 = vsub.f32 %v686, %v693
        %v695 = vmul.f32 %v694, 1.442695
        %v696 = vpow.pop %v695
        %v697 = vsel %vm644, %v696, 0.0
        %698 = vadd.xlane.f32.xlu0 %v697
        %v699 = vpop.xlane.xlu0 %698
        %v700 = vrcp.pop %v699
        %v701 = vmul.f32 %v696, %v700
        %v702 = vpack.c.bf16 %v701, %v701
        %v704 = vsel %vm644, %v702, 0
        %vm706 = vcmask 1043456
        %v708 = vsel %vm706, %v636, 0
        %710 = vmatprep.subr.bf16.mxu0 0
        %711 = vmatpush1.bf16.msra.mxu0 %v708
        %712 = vmatprep.subr.bf16.mxu0 0
        %713 = vmatpush1.bf16.msra.mxu0 0
        %714 = vmatprep.subr.bf16.mxu0 0
        %715 = vmatpush1.bf16.msra.mxu0 0
        %716 = vmatprep.subr.bf16.mxu0 0
        %717 = vmatpush1.bf16.msra.mxu0 0
        %718 = vmatprep.subr.bf16.mxu0 0
        %719 = vmatpush1.bf16.msra.mxu0 0
        %720 = vmatprep.subr.bf16.mxu0 0
        %721 = vmatpush1.bf16.msra.mxu0 0
        %722 = vmatprep.subr.bf16.mxu0 0
        %723 = vmatpush1.bf16.msra.mxu0 0
        %724 = vmatprep.subr.bf16.mxu0 0
        %725 = vmatpush1.bf16.msra.mxu0 0
        %726 = vmatprep.subr.bf16.mxu0 0
        %727 = vmatpush1.bf16.msra.mxu0 0
        %728 = vmatprep.subr.bf16.mxu0 0
        %729 = vmatpush1.bf16.msra.mxu0 0
        %730 = vmatprep.subr.bf16.mxu0 0
        %731 = vmatpush1.bf16.msra.mxu0 0
        %732 = vmatprep.subr.bf16.mxu0 0
        %733 = vmatpush1.bf16.msra.mxu0 0
        %734 = vmatprep.subr.bf16.mxu0 0
        %735 = vmatpush1.bf16.msra.mxu0 0
        %736 = vmatprep.subr.bf16.mxu0 0
        %737 = vmatpush1.bf16.msra.mxu0 0
        %738 = vmatprep.subr.bf16.mxu0 0
        %739 = vmatpush1.bf16.msra.mxu0 0
        %740 = vmatprep.subr.bf16.mxu0 0
        %741 = vmatpush1.bf16.msra.mxu0 0
        %742 = vmatprep.mubr.bf16.mxu0 0
        %743 = vmatmul.mubr.bf16.gmra.mrb[0].mxu0 %v704
        %v744 = vpop.f32.mrb[0].mxu0
        %v745 = vadd.f32 0.0, %v744
        %v746 = vpop.f32.mrb[0].mxu0
        %v747 = vpop.f32.mrb[0].mxu0
        %v748 = vpop.f32.mrb[0].mxu0
        %749 = vdwg.mxu0
        %v750 = vpack.c.bf16 %v745, %v745
        %vm751 = vcmask 60416
        %752 = vst.msk [vmem:[#allocation4] sm:$0xf] %vm751, %v750
        %754 = vrot.lane.b32.xlu0 %v634, 120
        %v755 = vpop.permute.xlu0 %754
        %v757 = vunpack.c.l.b16 %v635
        %v758 = vpack.c.b16 %v757, %v757
        %759 = vrot.lane.b32.xlu0 %v758, 120
        %v760 = vpop.permute.xlu0 %759
        %v762 = vsel %vm644, %v755, 0
        %v765 = vsel %vm644, %v760, 0
        %767 = vmatprep.subr.bf16.mxu0 0
        %768 = vmatpush1.bf16.xpose.msra.mxu0 %v765
        %769 = vmatprep.subr.bf16.mxu0 0
        %770 = vmatpush1.bf16.xpose.msra.mxu0 0
        %771 = vmatprep.subr.bf16.mxu0 0
        %772 = vmatpush1.bf16.xpose.msra.mxu0 0
        %773 = vmatprep.subr.bf16.mxu0 0
        %774 = vmatpush1.bf16.xpose.msra.mxu0 0
        %775 = vmatprep.subr.bf16.mxu0 0
        %776 = vmatpush1.bf16.xpose.msra.mxu0 0
        %777 = vmatprep.subr.bf16.mxu0 0
        %778 = vmatpush1.bf16.xpose.msra.mxu0 0
        %779 = vmatprep.subr.bf16.mxu0 0
        %780 = vmatpush1.bf16.xpose.msra.mxu0 0
        %781 = vmatprep.subr.bf16.mxu0 0
        %782 = vmatpush1.bf16.xpose.msra.mxu0 0
        %783 = vmatprep.subr.bf16.mxu0 0
        %784 = vmatpush1.bf16.xpose.msra.mxu0 0
        %785 = vmatprep.subr.bf16.mxu0 0
        %786 = vmatpush1.bf16.xpose.msra.mxu0 0
        %787 = vmatprep.subr.bf16.mxu0 0
        %788 = vmatpush1.bf16.xpose.msra.mxu0 0
        %789 = vmatprep.subr.bf16.mxu0 0
        %790 = vmatpush1.bf16.xpose.msra.mxu0 0
        %791 = vmatprep.subr.bf16.mxu0 0
        %792 = vmatpush1.bf16.xpose.msra.mxu0 0
        %793 = vmatprep.subr.bf16.mxu0 0
        %794 = vmatpush1.bf16.xpose.msra.mxu0 0
        %795 = vmatprep.subr.bf16.mxu0 0
        %796 = vmatpush1.bf16.xpose.msra.mxu0 0
        %797 = vmatprep.subr.bf16.mxu0 0
        %798 = vmatpush1.bf16.xpose.msra.mxu0 0
        %799 = vmatprep.mubr.bf16.mxu0 0
        %800 = vmatmul.mubr.bf16.gmra.mrb[0].mxu0 %v762
        %v801 = vpop.f32.mrb[0].mxu0
        %v802 = vadd.f32 %v642, %v801
        %v803 = vpop.f32.mrb[0].mxu0
        %v804 = vpop.f32.mrb[0].mxu0
        %v805 = vpop.f32.mrb[0].mxu0
        %806 = vdwg.mxu0
        %v807 = vsel %vm644, %v802, -inf
        %808 = vmax.xlane.f32.xlu0 %v807
        %v809 = vpop.xlane.xlu0 %808
        %v810 = vsub.f32 %v802, %v809
        %v811 = vmul.f32 %v810, 1.442695
        %v812 = vpow.pop %v811
        %v813 = vsel %vm644, %v812, 0.0
        %814 = vadd.xlane.f32.xlu0 %v813
        %v815 = vpop.xlane.xlu0 %814
        %v816 = vrcp.pop %v815
        %v817 = vmul.f32 %v812, %v816
        %v818 = vpack.c.bf16 %v817, %v817
        %v820 = vunpack.c.l.b16 %v636
        %v821 = vpack.c.b16 %v820, %v820
        %822 = vrot.lane.b32.xlu0 %v821, 120
        %v823 = vpop.permute.xlu0 %822
        %v825 = vsel %vm644, %v818, 0
        %v828 = vsel %vm706, %v823, 0
        %830 = vmatprep.subr.bf16.mxu0 0
        %831 = vmatpush1.bf16.msra.mxu0 %v828
        %832 = vmatprep.subr.bf16.mxu0 0
        %833 = vmatpush1.bf16.msra.mxu0 0
        %834 = vmatprep.subr.bf16.mxu0 0
        %835 = vmatpush1.bf16.msra.mxu0 0
        %836 = vmatprep.subr.bf16.mxu0 0
        %837 = vmatpush1.bf16.msra.mxu0 0
        %838 = vmatprep.subr.bf16.mxu0 0
        %839 = vmatpush1.bf16.msra.mxu0 0
        %840 = vmatprep.subr.bf16.mxu0 0
        %841 = vmatpush1.bf16.msra.mxu0 0
        %842 = vmatprep.subr.bf16.mxu0 0
        %843 = vmatpush1.bf16.msra.mxu0 0
        %844 = vmatprep.subr.bf16.mxu0 0
        %845 = vmatpush1.bf16.msra.mxu0 0
        %846 = vmatprep.subr.bf16.mxu0 0
        %847 = vmatpush1.bf16.msra.mxu0 0
        %848 = vmatprep.subr.bf16.mxu0 0
        %849 = vmatpush1.bf16.msra.mxu0 0
        %850 = vmatprep.subr.bf16.mxu0 0
        %851 = vmatpush1.bf16.msra.mxu0 0
        %852 = vmatprep.subr.bf16.mxu0 0
        %853 = vmatpush1.bf16.msra.mxu0 0
        %854 = vmatprep.subr.bf16.mxu0 0
        %855 = vmatpush1.bf16.msra.mxu0 0
        %856 = vmatprep.subr.bf16.mxu0 0
        %857 = vmatpush1.bf16.msra.mxu0 0
        %858 = vmatprep.subr.bf16.mxu0 0
        %859 = vmatpush1.bf16.msra.mxu0 0
        %860 = vmatprep.subr.bf16.mxu0 0
        %861 = vmatpush1.bf16.msra.mxu0 0
        %862 = vmatprep.mubr.bf16.mxu0 0
        %863 = vmatmul.mubr.bf16.gmra.mrb[0].mxu0 %v825
        %v864 = vpop.f32.mrb[0].mxu0
        %v865 = vadd.f32 0.0, %v864
        %v866 = vpop.f32.mrb[0].mxu0
        %v867 = vpop.f32.mrb[0].mxu0
        %v868 = vpop.f32.mrb[0].mxu0
        %869 = vdwg.mxu0
        %v870 = vpack.c.bf16 %v865, %v865
        %v872 = vunpack.c.l.b16 %v870
        %v873 = vpack.c.b16 %v872, %v872
        %874 = vrot.lane.b32.xlu0 %v873, 8
        %v875 = vpop.permute.xlu0 %874
        %vm877 = vcmask 126016
        %878 = vst.msk [vmem:[#allocation4] sm:$0xf] %vm877, %v875
        %879 = vrot.lane.b32.xlu0 %v634, 112
        %v880 = vpop.permute.xlu0 %879
        %881 = vrot.lane.b32.xlu0 %v758, 112
        %v882 = vpop.permute.xlu0 %881
        %v884 = vsel %vm644, %v880, 0
        %v887 = vsel %vm644, %v882, 0
        %889 = vmatprep.subr.bf16.mxu0 0
        %890 = vmatpush1.bf16.xpose.msra.mxu0 %v887
        %891 = vmatprep.subr.bf16.mxu0 0
        %892 = vmatpush1.bf16.xpose.msra.mxu0 0
        %893 = vmatprep.subr.bf16.mxu0 0
        %894 = vmatpush1.bf16.xpose.msra.mxu0 0
        %895 = vmatprep.subr.bf16.mxu0 0
        %896 = vmatpush1.bf16.xpose.msra.mxu0 0
        %897 = vmatprep.subr.bf16.mxu0 0
        %898 = vmatpush1.bf16.xpose.msra.mxu0 0
        %899 = vmatprep.subr.bf16.mxu0 0
        %900 = vmatpush1.bf16.xpose.msra.mxu0 0
        %901 = vmatprep.subr.bf16.mxu0 0
        %902 = vmatpush1.bf16.xpose.msra.mxu0 0
        %903 = vmatprep.subr.bf16.mxu0 0
        %904 = vmatpush1.bf16.xpose.msra.mxu0 0
        %905 = vmatprep.subr.bf16.mxu0 0
        %906 = vmatpush1.bf16.xpose.msra.mxu0 0
        %907 = vmatprep.subr.bf16.mxu0 0
        %908 = vmatpush1.bf16.xpose.msra.mxu0 0
        %909 = vmatprep.subr.bf16.mxu0 0
        %910 = vmatpush1.bf16.xpose.msra.mxu0 0
        %911 = vmatprep.subr.bf16.mxu0 0
        %912 = vmatpush1.bf16.xpose.msra.mxu0 0
        %913 = vmatprep.subr.bf16.mxu0 0
        %914 = vmatpush1.bf16.xpose.msra.mxu0 0
        %915 = vmatprep.subr.bf16.mxu0 0
        %916 = vmatpush1.bf16.xpose.msra.mxu0 0
        %917 = vmatprep.subr.bf16.mxu0 0
        %918 = vmatpush1.bf16.xpose.msra.mxu0 0
        %919 = vmatprep.subr.bf16.mxu0 0
        %920 = vmatpush1.bf16.xpose.msra.mxu0 0
        %921 = vmatprep.mubr.bf16.mxu0 0
        %922 = vmatmul.mubr.bf16.gmra.mrb[0].mxu0 %v884
        %v923 = vpop.f32.mrb[0].mxu0
        %v924 = vadd.f32 %v642, %v923
        %v925 = vpop.f32.mrb[0].mxu0
        %v926 = vpop.f32.mrb[0].mxu0
        %v927 = vpop.f32.mrb[0].mxu0
        %928 = vdwg.mxu0
        %v929 = vsel %vm644, %v924, -inf
        %930 = vmax.xlane.f32.xlu0 %v929
        %v931 = vpop.xlane.xlu0 %930
        %v932 = vsub.f32 %v924, %v931
        %v933 = vmul.f32 %v932, 1.442695
        %v934 = vpow.pop %v933
        %v935 = vsel %vm644, %v934, 0.0
        %936 = vadd.xlane.f32.xlu0 %v935
        %v937 = vpop.xlane.xlu0 %936
        %v938 = vrcp.pop %v937
        %v939 = vmul.f32 %v934, %v938
        %v940 = vpack.c.bf16 %v939, %v939
        %941 = vrot.lane.b32.xlu0 %v821, 112
        %v942 = vpop.permute.xlu0 %941
        %v944 = vsel %vm644, %v940, 0
        %v947 = vsel %vm706, %v942, 0
        %949 = vmatprep.subr.bf16.mxu0 0
        %950 = vmatpush1.bf16.msra.mxu0 %v947
        %951 = vmatprep.subr.bf16.mxu0 0
        %952 = vmatpush1.bf16.msra.mxu0 0
        %953 = vmatprep.subr.bf16.mxu0 0
        %954 = vmatpush1.bf16.msra.mxu0 0
        %955 = vmatprep.subr.bf16.mxu0 0
        %956 = vmatpush1.bf16.msra.mxu0 0
        %957 = vmatprep.subr.bf16.mxu0 0
        %958 = vmatpush1.bf16.msra.mxu0 0
        %959 = vmatprep.subr.bf16.mxu0 0
        %960 = vmatpush1.bf16.msra.mxu0 0
        %961 = vmatprep.subr.bf16.mxu0 0
        %962 = vmatpush1.bf16.msra.mxu0 0
        %963 = vmatprep.subr.bf16.mxu0 0
        %964 = vmatpush1.bf16.msra.mxu0 0
        %965 = vmatprep.subr.bf16.mxu0 0
        %966 = vmatpush1.bf16.msra.mxu0 0
        %967 = vmatprep.subr.bf16.mxu0 0
        %968 = vmatpush1.bf16.msra.mxu0 0
        %969 = vmatprep.subr.bf16.mxu0 0
        %970 = vmatpush1.bf16.msra.mxu0 0
        %971 = vmatprep.subr.bf16.mxu0 0
        %972 = vmatpush1.bf16.msra.mxu0 0
        %973 = vmatprep.subr.bf16.mxu0 0
        %974 = vmatpush1.bf16.msra.mxu0 0
        %975 = vmatprep.subr.bf16.mxu0 0
        %976 = vmatpush1.bf16.msra.mxu0 0
        %977 = vmatprep.subr.bf16.mxu0 0
        %978 = vmatpush1.bf16.msra.mxu0 0
        %979 = vmatprep.subr.bf16.mxu0 0
        %980 = vmatpush1.bf16.msra.mxu0 0
        %981 = vmatprep.mubr.bf16.mxu0 0
        %982 = vmatmul.mubr.bf16.gmra.mrb[0].mxu0 %v944
        %v983 = vpop.f32.mrb[0].mxu0
        %v984 = vadd.f32 0.0, %v983
        %v985 = vpop.f32.mrb[0].mxu0
        %v986 = vpop.f32.mrb[0].mxu0
        %v987 = vpop.f32.mrb[0].mxu0
        %988 = vdwg.mxu0
        %v989 = vpack.c.bf16 %v984, %v984
        %v991 = vunpack.c.l.b16 %v989
        %v992 = vpack.c.b16 %v991, %v991
        %993 = vrot.lane.b32.xlu0 %v992, 16
        %v994 = vpop.permute.xlu0 %993
        %vm996 = vcmask 191616
        %997 = vst.msk [vmem:[#allocation4] sm:$0xf] %vm996, %v994
        %998 = vrot.lane.b32.xlu0 %v634, 104
        %v999 = vpop.permute.xlu0 %998
        %1000 = vrot.lane.b32.xlu0 %v758, 104
        %v1001 = vpop.permute.xlu0 %1000
        %v1003 = vsel %vm644, %v999, 0
        %v1006 = vsel %vm644, %v1001, 0
        %1008 = vmatprep.subr.bf16.mxu0 0
        %1009 = vmatpush1.bf16.xpose.msra.mxu0 %v1006
        %1010 = vmatprep.subr.bf16.mxu0 0
        %1011 = vmatpush1.bf16.xpose.msra.mxu0 0
        %1012 = vmatprep.subr.bf16.mxu0 0
        %1013 = vmatpush1.bf16.xpose.msra.mxu0 0
        %1014 = vmatprep.subr.bf16.mxu0 0
        %1015 = vmatpush1.bf16.xpose.msra.mxu0 0
        %1016 = vmatprep.subr.bf16.mxu0 0
        %1017 = vmatpush1.bf16.xpose.msra.mxu0 0
        %1018 = vmatprep.subr.bf16.mxu0 0
        %1019 = vmatpush1.bf16.xpose.msra.mxu0 0
        %1020 = vmatprep.subr.bf16.mxu0 0
        %1021 = vmatpush1.bf16.xpose.msra.mxu0 0
        %1022 = vmatprep.subr.bf16.mxu0 0
        %1023 = vmatpush1.bf16.xpose.msra.mxu0 0
        %1024 = vmatprep.subr.bf16.mxu0 0
        %1025 = vmatpush1.bf16.xpose.msra.mxu0 0
        %1026 = vmatprep.subr.bf16.mxu0 0
        %1027 = vmatpush1.bf16.xpose.msra.mxu0 0
        %1028 = vmatprep.subr.bf16.mxu0 0
        %1029 = vmatpush1.bf16.xpose.msra.mxu0 0
        %1030 = vmatprep.subr.bf16.mxu0 0
        %1031 = vmatpush1.bf16.xpose.msra.mxu0 0
        %1032 = vmatprep.subr.bf16.mxu0 0
        %1033 = vmatpush1.bf16.xpose.msra.mxu0 0
        %1034 = vmatprep.subr.bf16.mxu0 0
        %1035 = vmatpush1.bf16.xpose.msra.mxu0 0
        %1036 = vmatprep.subr.bf16.mxu0 0
        %1037 = vmatpush1.bf16.xpose.msra.mxu0 0
        %1038 = vmatprep.subr.bf16.mxu0 0
        %1039 = vmatpush1.bf16.xpose.msra.mxu0 0
        %1040 = vmatprep.mubr.bf16.mxu0 0
        %1041 = vmatmul.mubr.bf16.gmra.mrb[0].mxu0 %v1003
        %v1042 = vpop.f32.mrb[0].mxu0
        %v1043 = vadd.f32 %v642, %v1042
        %v1044 = vpop.f32.mrb[0].mxu0
        %v1045 = vpop.f32.mrb[0].mxu0
        %v1046 = vpop.f32.mrb[0].mxu0
        %1047 = vdwg.mxu0
        %v1048 = vsel %vm644, %v1043, -inf
        %1049 = vmax.xlane.f32.xlu0 %v1048
        %v1050 = vpop.xlane.xlu0 %1049
        %v1051 = vsub.f32 %v1043, %v1050
        %v1052 = vmul.f32 %v1051, 1.442695
        %v1053 = vpow.pop %v1052
        %v1054 = vsel %vm644, %v1053, 0.0
        %1055 = vadd.xlane.f32.xlu0 %v1054
        %v1056 = vpop.xlane.xlu0 %1055
        %v1057 = vrcp.pop %v1056
        %v1058 = vmul.f32 %v1053, %v1057
        %v1059 = vpack.c.bf16 %v1058, %v1058
        %1060 = vrot.lane.b32.xlu0 %v821, 104
        %v1061 = vpop.permute.xlu0 %1060
        %v1063 = vsel %vm644, %v1059, 0
        %v1066 = vsel %vm706, %v1061, 0
        %1068 = vmatprep.subr.bf16.mxu0 0
        %1069 = vmatpush1.bf16.msra.mxu0 %v1066
        %1070 = vmatprep.subr.bf16.mxu0 0
        %1071 = vmatpush1.bf16.msra.mxu0 0
        %1072 = vmatprep.subr.bf16.mxu0 0
        %1073 = vmatpush1.bf16.msra.mxu0 0
        %1074 = vmatprep.subr.bf16.mxu0 0
        %1075 = vmatpush1.bf16.msra.mxu0 0
        %1076 = vmatprep.subr.bf16.mxu0 0
        %1077 = vmatpush1.bf16.msra.mxu0 0
        %1078 = vmatprep.subr.bf16.mxu0 0
        %1079 = vmatpush1.bf16.msra.mxu0 0
        %1080 = vmatprep.subr.bf16.mxu0 0
        %1081 = vmatpush1.bf16.msra.mxu0 0
        %1082 = vmatprep.subr.bf16.mxu0 0
        %1083 = vmatpush1.bf16.msra.mxu0 0
        %1084 = vmatprep.subr.bf16.mxu0 0
        %1085 = vmatpush1.bf16.msra.mxu0 0
        %1086 = vmatprep.subr.bf16.mxu0 0
        %1087 = vmatpush1.bf16.msra.mxu0 0
        %1088 = vmatprep.subr.bf16.mxu0 0
        %1089 = vmatpush1.bf16.msra.mxu0 0
        %1090 = vmatprep.subr.bf16.mxu0 0
        %1091 = vmatpush1.bf16.msra.mxu0 0
        %1092 = vmatprep.subr.bf16.mxu0 0
        %1093 = vmatpush1.bf16.msra.mxu0 0
        %1094 = vmatprep.subr.bf16.mxu0 0
        %1095 = vmatpush1.bf16.msra.mxu0 0
        %1096 = vmatprep.subr.bf16.mxu0 0
        %1097 = vmatpush1.bf16.msra.mxu0 0
        %1098 = vmatprep.subr.bf16.mxu0 0
        %1099 = vmatpush1.bf16.msra.mxu0 0
        %1100 = vmatprep.mubr.bf16.mxu0 0
        %1101 = vmatmul.mubr.bf16.gmra.mrb[0].mxu0 %v1063
        %v1102 = vpop.f32.mrb[0].mxu0
        %v1103 = vadd.f32 0.0, %v1102
        %v1104 = vpop.f32.mrb[0].mxu0
        %v1105 = vpop.f32.mrb[0].mxu0
        %v1106 = vpop.f32.mrb[0].mxu0
        %1107 = vdwg.mxu0
        %v1108 = vpack.c.bf16 %v1103, %v1103
        %v1110 = vunpack.c.l.b16 %v1108
        %v1111 = vpack.c.b16 %v1110, %v1110
        %1112 = vrot.lane.b32.xlu0 %v1111, 24
        %v1113 = vpop.permute.xlu0 %1112
        %vm1115 = vcmask 257216
        %1116 = vst.msk [vmem:[#allocation4] sm:$0xf] %vm1115, %v1113
        %v1117 = vld [vmem:[#allocation4] sm:$0xf]
        %v1118 = vld [vmem:[#allocation13] sm:$0xf]
        %v1119 = vld [vmem:[#allocation13 + $0x4] sm:$0xf]
        %v1120 = vld [vmem:[#allocation13 + $0x8] sm:$0xf]
        %v1121 = vld [vmem:[#allocation13 + $0xc] sm:$0xf]
        %v1122 = vld [vmem:[%s8] sm:$0x1]
        %v1124 = vlaneseq
        %v1125 = vshrl.u32 %v1124, 7
        %v1126 = vsub.s32 0, %v1125
        %v1127 = vrot.slane %v1122, %v1126
        %v1133 = vunpack.c.l.b16 %v1118
        %v1134 = vunpack.c.l.b16 %v1119
        %v1135 = vunpack.c.l.b16 %v1120
        %v1136 = vunpack.c.l.b16 %v1121
        %v1137 = vpack.c.b16 %v1134, %v1133
        %v1138 = vpack.c.b16 %v1136, %v1135
        %v1142 = vsel %vm450, %v1117, 0
        %1144 = vmatprep.subr.bf16.mxu0 0
        %1145 = vmatpush1.bf16.msra.mxu0 %v1137
        %1146 = vmatprep.subr.bf16.mxu0 0
        %1147 = vmatpush1.bf16.msra.mxu0 %v1138
        %1148 = vmatprep.subr.bf16.mxu0 0
        %1149 = vmatpush1.bf16.msra.mxu0 0
        %1150 = vmatprep.subr.bf16.mxu0 0
        %1151 = vmatpush1.bf16.msra.mxu0 0
        %1152 = vmatprep.subr.bf16.mxu0 0
        %1153 = vmatpush1.bf16.msra.mxu0 0
        %1154 = vmatprep.subr.bf16.mxu0 0
        %1155 = vmatpush1.bf16.msra.mxu0 0
        %1156 = vmatprep.subr.bf16.mxu0 0
        %1157 = vmatpush1.bf16.msra.mxu0 0
        %1158 = vmatprep.subr.bf16.mxu0 0
        %1159 = vmatpush1.bf16.msra.mxu0 0
        %1160 = vmatprep.subr.bf16.mxu0 0
        %1161 = vmatpush1.bf16.msra.mxu0 0
        %1162 = vmatprep.subr.bf16.mxu0 0
        %1163 = vmatpush1.bf16.msra.mxu0 0
        %1164 = vmatprep.subr.bf16.mxu0 0
        %1165 = vmatpush1.bf16.msra.mxu0 0
        %1166 = vmatprep.subr.bf16.mxu0 0
        %1167 = vmatpush1.bf16.msra.mxu0 0
        %1168 = vmatprep.subr.bf16.mxu0 0
        %1169 = vmatpush1.bf16.msra.mxu0 0
        %1170 = vmatprep.subr.bf16.mxu0 0
        %1171 = vmatpush1.bf16.msra.mxu0 0
        %1172 = vmatprep.subr.bf16.mxu0 0
        %1173 = vmatpush1.bf16.msra.mxu0 0
        %1174 = vmatprep.subr.bf16.mxu0 0
        %1175 = vmatpush1.bf16.msra.mxu0 0
        %1176 = vmatprep.mubr.bf16.mxu0 0
        %1177 = vmatmul.mubr.bf16.gmra.mrb[0].mxu0 %v1142
        %v1178 = vpop.f32.mrb[0].mxu0
        %v1179 = vadd.f32 %v1127, %v1178
        %v1180 = vpop.f32.mrb[0].mxu0
        %v1181 = vpop.f32.mrb[0].mxu0
        %v1182 = vpop.f32.mrb[0].mxu0
        %1183 = vdwg.mxu0
        %1184 = vst.msk [vmem:[%s428] sm:$0xff] %vm450, %v1179
        %s1185 = sand.u32 %s249, 1
        %s1186 = scalar_lea.sflag [#allocation7], %s1185
        %s1187 = sand.u32 %s249, 1
        %s1188 = smul.addr %s1187, 8
        %s1189 = scalar_lea.vmem [#allocation14], %s1188
        // Predicated region
        $region77: #{tpu_custom_call.1} parent=55 // pred_check
          %p1190 = pneg %p259
        $region78: #{tpu_custom_call.1} parent=55 // pred_check_branch
          %1192 = sbr.rel (%p1190) target = $region80
        $region79: #{tpu_custom_call.1} parent=55 // pred_region
          %s1194 = ssub.s32 128, 128
          %1195 = vsyncadd %s1186, %s1194
          %s1196 = sadd.s32 %s33, %s32
          %s1197 = smul.addr %s1196, 128
          %s1198 = scalar_lea.hbm %s9, %s1197
          %s1200 = sshll.u32 %s1189, 4
          %s1201 = int_to_ptr.vmem [resolvable:$true] %s1200
          %1203 = dma.vmem_to_hbm [thread:$0]  %s1201, 128, %s1198, %s1186
        $region80: #{tpu_custom_call.1} parent=55 // pred_fallthru
          _
      $region56: #{tpu_custom_call.1} parent=5 // pred_fallthru
        _
      %p1204 = scmp.le.s32.totalorder 2, %s23
      // Predicated region
      $region81: #{tpu_custom_call.1} parent=5 // pred_check
        %p1205 = pneg %p1204
      $region82: #{tpu_custom_call.1} parent=5 // pred_check_branch
        %1207 = sbr.rel (%p1205) target = $region84
      $region83: #{tpu_custom_call.1} parent=5 // pred_region
        %s1208 = ssub.s32 %s23, 2
        // Predicated region
        $region85: #{tpu_custom_call.1} parent=83 // pred_check
          %p1209 = pneg %p265
        $region86: #{tpu_custom_call.1} parent=83 // pred_check_branch
          %1211 = sbr.rel (%p1209) target = $region88
        $region87: #{tpu_custom_call.1} parent=83 // pred_region
          %s1212 = sand.u32 %s250, 1
          %s1213 = scalar_lea.sflag [#allocation7], %s1212
          %s1214 = sand.u32 %s250, 1
          %s1215 = smul.addr %s1214, 8
          %s1216 = scalar_lea.vmem [#allocation14], %s1215
          %1217 = dma.done %s1213, 128
        $region88: #{tpu_custom_call.1} parent=83 // pred_fallthru
          _
      $region84: #{tpu_custom_call.1} parent=5 // pred_fallthru
        _
    $region6: #{tpu_custom_call.1} parent=1 // loop_footer
      %s27 = sadd.s32 1, %s23
    $region7: #{tpu_custom_call.1} parent=1 // loop_footer_branch
      %22 = sbr.rel target = $region3
    $region8: #{tpu_custom_call.1} parent=1 // loop_exit
      _
    %1218 = vsyncpa [#allocation6], 1
    %s1219 = scalar_lea.sflag [#allocation6], 1
    %1220 = vsyncpa %s1219, 1
    %1221 = vsyncpa [#allocation9], 1
    %1222 = vsyncpa [#allocation12], 1
    %1223 = vsyncpa [#allocation7], 1
    %s1224 = scalar_lea.sflag [#allocation7], 1
    %1225 = vsyncpa %s1224, 1

</llo_original>
